<compile_context>
chip_gen: v5e
topology: v5e:2x2
jax: 0.10.0
libtpu: 0.0.40
codegen_flags: <defaults>
</compile_context>

<pallas_src>
import functools

import jax
import jax.numpy as jnp
from jax.experimental import pallas as pl
from jax.experimental.pallas import tpu as pltpu


# ----------------------------- in-kernel helpers -----------------------------

_LN_EPS = 1e-12  # BERT default layer_norm_eps


def _layer_norm(x, gamma, beta):
    # Fused-moment LN: one pass over x computes sum(x) and sum(x*x).
    # x: (T, H) f32, gamma/beta: (1, H)
    inv_n = 1.0 / x.shape[-1]
    s1 = jnp.sum(x, axis=-1, keepdims=True)
    s2 = jnp.sum(x * x, axis=-1, keepdims=True)
    mu = s1 * inv_n
    var = s2 * inv_n - mu * mu
    return (x - mu) * jax.lax.rsqrt(var + _LN_EPS) * gamma + beta


def _gelu(x):
    # tanh-approx GELU. TODO(synk): HF BERT default is exact erf-based gelu.
    return 0.5 * x * (1.0 + jnp.tanh(0.7978845608028654 * (x + 0.044715 * x * x * x)))


# --------------------------- generation-aware config --------------------------

def _tpu_generation():
    try:
        kind = jax.devices()[0].device_kind.lower()
    except Exception:  # pragma: no cover - CPU fallback etc.
        return "unknown"
    if "v7" in kind:
        return "v7x"
    if "v6" in kind:
        return "v6e"
    if "v5" in kind:
        return "v5e"
    return "unknown"


def _kernel_config():
    gen = _tpu_generation()
    if gen == "v7x":
        # 64 MiB VMEM: keep FFN K-tiled (ti=512), query-tile attention, cap VMEM.
        return dict(gen=gen, head_group=4, ffn_resident=False, ffn_i_tile=512,
                    ffn_seq_tile=512, attn_q_tile=256, embed_seq_tile=512,
                    vmem_limit=56 * 1024 * 1024)
    if gen == "v6e":
        # 128 MiB VMEM: FFN weights fully resident, 256-wide MXU -> 4 heads/group.
        return dict(gen=gen, head_group=4, ffn_resident=True, ffn_i_tile=512,
                    ffn_seq_tile=512, attn_q_tile=256, embed_seq_tile=512,
                    vmem_limit=100 * 1024 * 1024)
    if gen == "v5e":
        # 128-wide MXU -> 2 heads/group; FFN weights fully resident.
        return dict(gen=gen, head_group=2, ffn_resident=True, ffn_i_tile=256,
                    ffn_seq_tile=512, attn_q_tile=256, embed_seq_tile=512,
                    vmem_limit=100 * 1024 * 1024)
    # Unknown chip: conservative defaults that still run everywhere.
    return dict(gen=gen, head_group=2, ffn_resident=True, ffn_i_tile=256,
                ffn_seq_tile=256, attn_q_tile=256, embed_seq_tile=256,
                vmem_limit=48 * 1024 * 1024)


def _pick_head_group(num_heads, preferred):
    g = min(preferred, num_heads)
    while g > 1 and num_heads % g != 0:
        g -= 1
    return max(g, 1)


def _pick_tile(n, pref, floor=8):
    """Largest power-of-two-ish tile <= pref dividing n, else full extent."""
    if n <= pref:
        return n
    t = pref
    while t >= floor and n % t != 0:
        t //= 2
    return t if (t >= floor and n % t == 0) else n


# ------------------------------- Pallas kernels -------------------------------

def embed_ln_kernel(word_ref, pos_ref, tok_ref, g_ref, b_ref, o_ref):
    # Fused word + position + token_type add, then LayerNorm.
    # word_ref: (1, ts, H) f32; pos_ref: (ts, H) f32; tok_ref: (1, H) f32.
    x = word_ref[0] + pos_ref[...] + tok_ref[...]
    o_ref[0] = _layer_norm(x, g_ref[...], b_ref[...]).astype(o_ref.dtype)


def attention_ln_kernel(xq_ref, xkv_ref,
                        wq_ref, bq_ref, wk_ref, bk_ref, wv_ref, bv_ref,
                        wo_ref, bo_ref, g1_ref, be1_ref,
                        o_ref, acc_ref, *, heads_per_group, head_dim):
    # grid = (B, S//tq, num_head_groups); the group axis is "arbitrary".
    # xq_ref : (1, tq, H) bf16  (query rows + residual, resident across groups)
    # xkv_ref: (1, S,  H) bf16  (full sequence for K/V)
    # wq/wk/wv_ref: (1, H, g*hd) bf16 (scale folded into wq); wo_ref: (1, g*hd, H)
    hg = pl.program_id(2)

    @pl.when(hg == 0)
    def _():
        acc_ref[...] = jnp.zeros_like(acc_ref)

    xq = xq_ref[0]                                          # (tq, H) bf16
    xkv = xkv_ref[0]                                        # (S, H)  bf16
    wq = wq_ref[0]
    wk = wk_ref[0]
    wv = wv_ref[0]
    wo = wo_ref[0]                                          # (g*hd, H) bf16

    # Wide (g*hd-lane) QKV projections, f32 accumulation on the MXU.
    q = jnp.dot(xq, wq, preferred_element_type=jnp.float32) + bq_ref[0]   # (tq, g*hd)
    k = jnp.dot(xkv, wk, preferred_element_type=jnp.float32) + bk_ref[0]  # (S, g*hd)
    v = jnp.dot(xkv, wv, preferred_element_type=jnp.float32) + bv_ref[0]

    # Per-head score/softmax/context (small unrolled loop); output projection
    # accumulated across heads & groups -> no lane-axis concatenate.
    # TODO(synk): no attention/padding mask is applied (HF BertModel masks pads).
    for h in range(heads_per_group):
        lo = h * head_dim
        hi = lo + head_dim
        qh = q[:, lo:hi].astype(jnp.bfloat16)
        kh = k[:, lo:hi].astype(jnp.bfloat16)
        vh = v[:, lo:hi].astype(jnp.bfloat16)

        # scores via dot_general NT form (contract last dims -> no XLU .T)
        s = jax.lax.dot_general(qh, kh, (((1,), (1,)), ((), ())),
                                preferred_element_type=jnp.float32)       # (tq, S)
        m = jnp.max(s, axis=-1, keepdims=True)
        p = jnp.exp(s - m)                                                # <= 1
        l = jnp.sum(p, axis=-1, keepdims=True)
        ctx = jnp.dot(p.astype(jnp.bfloat16), vh,
                      preferred_element_type=jnp.float32)                 # (tq, hd)
        # deferred softmax normalisation: scale (tq, hd) instead of (tq, S)
        ctx = ctx * pl.reciprocal(l, approx=True)

        acc_ref[...] += jnp.dot(ctx.astype(jnp.bfloat16), wo[lo:hi, :],
                                preferred_element_type=jnp.float32)       # (tq, H)

    @pl.when(hg == pl.num_programs(2) - 1)
    def _():
        attn = acc_ref[...] + bo_ref[...]
        resid = xq.astype(jnp.float32) + attn
        o_ref[0] = _layer_norm(resid, g1_ref[...], be1_ref[...]).astype(o_ref.dtype)


def ffn_ln_resident_kernel(h1_ref, w1_ref, b1_ref, w2_ref, b2_ref,
                           g2_ref, be2_ref, o_ref):
    # grid = (B, S//ts); W1/W2 fully resident (constant index maps) -> weights
    # fetched once per layer, no reduction loop, no accumulator scratch.
    h1 = h1_ref[0]                                          # (ts, H) bf16
    ff = jnp.dot(h1, w1_ref[...], preferred_element_type=jnp.float32) + b1_ref[...]
    ff = _gelu(ff)
    out = jnp.dot(ff.astype(jnp.bfloat16), w2_ref[...],
                  preferred_element_type=jnp.float32)
    out = h1.astype(jnp.float32) + out + b2_ref[...]
    o_ref[0] = _layer_norm(out, g2_ref[...], be2_ref[...]).astype(o_ref.dtype)


def ffn_ln_ktiled_kernel(h1_ref, w1_ref, b1_ref, w2_ref, b2_ref,
                         g2_ref, be2_ref, o_ref, acc_ref):
    # grid = (B, S//ts, I//ti); I is a K-tiled "arbitrary" reduction (v7x path).
    i = pl.program_id(2)

    @pl.when(i == 0)
    def _():
        acc_ref[...] = jnp.zeros_like(acc_ref)

    h1 = h1_ref[0]                                          # (ts, H) bf16
    ff = jnp.dot(h1, w1_ref[...], preferred_element_type=jnp.float32) + b1_ref[...]
    ff = _gelu(ff)                                          # elementwise in I -> tile-safe
    acc_ref[...] += jnp.dot(ff.astype(jnp.bfloat16), w2_ref[...],
                            preferred_element_type=jnp.float32)

    @pl.when(i == pl.num_programs(2) - 1)
    def _():
        out = h1.astype(jnp.float32) + acc_ref[...] + b2_ref[...]
        o_ref[0] = _layer_norm(out, g2_ref[...], be2_ref[...]).astype(o_ref.dtype)


def classifier_kernel(cls_ref, org_ref, wc_ref, wo_ref, b_ref, o_ref):
    # torch.cat((cls, org), dim=1) @ W + b  ==  cls @ W[:H] + org @ W[H:] + b
    logits = (jnp.dot(cls_ref[...].astype(jnp.bfloat16), wc_ref[...],
                      preferred_element_type=jnp.float32)
              + jnp.dot(org_ref[...].astype(jnp.bfloat16), wo_ref[...],
                        preferred_element_type=jnp.float32)
              + b_ref[...])
    o_ref[...] = logits.astype(o_ref.dtype)


# ------------------------------- wrappers (glue) -------------------------------

def embed_layernorm(word, pos, tok, gamma, beta, cfg):
    B, S, H = word.shape
    ts = _pick_tile(S, cfg["embed_seq_tile"])
    return pl.pallas_call(
        embed_ln_kernel,
        out_shape=jax.ShapeDtypeStruct((B, S, H), jnp.bfloat16),
        grid=(B, S // ts),
        in_specs=[pl.BlockSpec((1, ts, H), lambda b, s: (b, s, 0)),
                  pl.BlockSpec((ts, H), lambda b, s: (s, 0)),
                  pl.BlockSpec((1, H), lambda b, s: (0, 0)),
                  pl.BlockSpec((1, H), lambda b, s: (0, 0)),
                  pl.BlockSpec((1, H), lambda b, s: (0, 0))],
        out_specs=pl.BlockSpec((1, ts, H), lambda b, s: (b, s, 0)),
        compiler_params=pltpu.CompilerParams(
            dimension_semantics=("parallel", "parallel")),
    )(word, pos, tok, gamma, beta)


def attention_block(x, layer, head_dim, cfg):
    """Self-attention + residual + LayerNorm1. Grid over (batch, q-tile, head-group)."""
    B, S, H = x.shape
    n_groups, _, ghd = layer["wq"].shape
    heads_per_group = ghd // head_dim
    tq = _pick_tile(S, cfg["attn_q_tile"])
    kernel = functools.partial(attention_ln_kernel,
                               heads_per_group=heads_per_group,
                               head_dim=head_dim)
    in_specs = [
        pl.BlockSpec((1, tq, H), lambda b, q, h: (b, q, 0)),   # x (queries/residual)
        pl.BlockSpec((1, S, H), lambda b, q, h: (b, 0, 0)),    # x (full seq for K/V)
        pl.BlockSpec((1, H, ghd), lambda b, q, h: (h, 0, 0)),  # Wq[group] (scale folded)
        pl.BlockSpec((1, 1, ghd), lambda b, q, h: (h, 0, 0)),  # bq[group]
        pl.BlockSpec((1, H, ghd), lambda b, q, h: (h, 0, 0)),  # Wk[group]
        pl.BlockSpec((1, 1, ghd), lambda b, q, h: (h, 0, 0)),  # bk[group]
        pl.BlockSpec((1, H, ghd), lambda b, q, h: (h, 0, 0)),  # Wv[group]
        pl.BlockSpec((1, 1, ghd), lambda b, q, h: (h, 0, 0)),  # bv[group]
        pl.BlockSpec((1, ghd, H), lambda b, q, h: (h, 0, 0)),  # Wo[group]
        pl.BlockSpec((1, H), lambda b, q, h: (0, 0)),          # bo
        pl.BlockSpec((1, H), lambda b, q, h: (0, 0)),          # LN1 gamma
        pl.BlockSpec((1, H), lambda b, q, h: (0, 0)),          # LN1 beta
    ]
    return pl.pallas_call(
        kernel,
        out_shape=jax.ShapeDtypeStruct((B, S, H), jnp.bfloat16),
        grid=(B, S // tq, n_groups),
        in_specs=in_specs,
        out_specs=pl.BlockSpec((1, tq, H), lambda b, q, h: (b, q, 0)),
        scratch_shapes=[pltpu.VMEM((tq, H), jnp.float32)],
        compiler_params=pltpu.CompilerParams(
            dimension_semantics=("parallel", "parallel", "arbitrary"),
            vmem_limit_bytes=cfg["vmem_limit"]),
    )(x, x, layer["wq"], layer["bq"], layer["wk"], layer["bk"],
      layer["wv"], layer["bv"], layer["wo"], layer["bo"],
      layer["g1"], layer["be1"])


def ffn_block(h1, layer, cfg):
    """FFN (H -> I -> H) + residual + LayerNorm2."""
    B, S, H = h1.shape
    I = layer["w1"].shape[1]
    ts = _pick_tile(S, cfg["ffn_seq_tile"])

    if cfg["ffn_resident"]:
        # v5e / v6e: W1/W2 fully VMEM-resident (constant index maps), fetched
        # once per layer instead of once per (b, s) tile.
        in_specs = [
            pl.BlockSpec((1, ts, H), lambda b, s: (b, s, 0)),
            pl.BlockSpec((H, I), lambda b, s: (0, 0)),
            pl.BlockSpec((1, I), lambda b, s: (0, 0)),
            pl.BlockSpec((I, H), lambda b, s: (0, 0)),
            pl.BlockSpec((1, H), lambda b, s: (0, 0)),
            pl.BlockSpec((1, H), lambda b, s: (0, 0)),
            pl.BlockSpec((1, H), lambda b, s: (0, 0)),
        ]
        return pl.pallas_call(
            ffn_ln_resident_kernel,
            out_shape=jax.ShapeDtypeStruct((B, S, H), jnp.bfloat16),
            grid=(B, S // ts),
            in_specs=in_specs,
            out_specs=pl.BlockSpec((1, ts, H), lambda b, s: (b, s, 0)),
            compiler_params=pltpu.CompilerParams(
                dimension_semantics=("parallel", "parallel"),
                vmem_limit_bytes=cfg["vmem_limit"]),
        )(h1, layer["w1"], layer["b1"], layer["w2"], layer["b2"],
          layer["g2"], layer["be2"])

    # v7x: K-tile the I reduction (ti=512) with an f32 VMEM accumulator.
    ti = _pick_tile(I, cfg["ffn_i_tile"], floor=128)
    in_specs = [
        pl.BlockSpec((1, ts, H), lambda b, s, i: (b, s, 0)),  # h1 (resident over i)
        pl.BlockSpec((H, ti), lambda b, s, i: (0, i)),        # W1 I-tile
        pl.BlockSpec((1, ti), lambda b, s, i: (0, i)),        # b1 I-tile
        pl.BlockSpec((ti, H), lambda b, s, i: (i, 0)),        # W2 I-tile
        pl.BlockSpec((1, H), lambda b, s, i: (0, 0)),         # b2
        pl.BlockSpec((1, H), lambda b, s, i: (0, 0)),         # LN2 gamma
        pl.BlockSpec((1, H), lambda b, s, i: (0, 0)),         # LN2 beta
    ]
    return pl.pallas_call(
        ffn_ln_ktiled_kernel,
        out_shape=jax.ShapeDtypeStruct((B, S, H), jnp.bfloat16),
        grid=(B, S // ts, I // ti),
        in_specs=in_specs,
        out_specs=pl.BlockSpec((1, ts, H), lambda b, s, i: (b, s, 0)),
        scratch_shapes=[pltpu.VMEM((ts, H), jnp.float32)],
        compiler_params=pltpu.CompilerParams(
            dimension_semantics=("parallel", "parallel", "arbitrary"),
            vmem_limit_bytes=cfg["vmem_limit"]),
    )(h1, layer["w1"], layer["b1"], layer["w2"], layer["b2"],
      layer["g2"], layer["be2"])


def classifier_head(cls_vec, org_vec, wc, wo, b):
    B, H = cls_vec.shape
    C = wc.shape[1]
    return pl.pallas_call(
        classifier_kernel,
        out_shape=jax.ShapeDtypeStruct((B, C), jnp.float32),
        grid=(1,),
        in_specs=[pl.BlockSpec((B, H), lambda i: (0, 0)),
                  pl.BlockSpec((B, H), lambda i: (0, 0)),
                  pl.BlockSpec((H, C), lambda i: (0, 0)),
                  pl.BlockSpec((H, C), lambda i: (0, 0)),
                  pl.BlockSpec((1, C), lambda i: (0, 0))],
        out_specs=pl.BlockSpec((B, C), lambda i: (0, 0)),
    )(cls_vec, org_vec, wc, wo, b)


def protbert_organism_classifier_forward(token_ids, org_ids, params, *, head_dim, cfg):
    """Full forward pass of ProtBertOrganismClassifier."""
    B, S = token_ids.shape

    # --- BertEmbeddings: gathers in plain JAX glue, add+LN fused in Pallas ---
    word = jnp.take(params["word_emb"], token_ids, axis=0)          # (B, S, H) f32
    pos = params["pos_emb"][:S]                                     # (S, H)
    tok = params["type_emb"][0][None, :]                            # token_type_ids = 0
    hidden = embed_layernorm(word, pos, tok,
                             params["emb_ln_g"], params["emb_ln_b"], cfg)  # bf16

    # --- Bert encoder layers (Pallas hot path, bf16 inter-kernel activations) ---
    for layer in params["layers"]:
        hidden = attention_block(hidden, layer, head_dim, cfg)
        hidden = ffn_block(hidden, layer, cfg)

    # --- last_hidden_state[:, 0, :] ---
    cls_vec = hidden[:, 0, :]                                       # (B, H) bf16

    # --- OrganismEmbedding (gather in glue) ---
    org_vec = jnp.take(params["org_emb"], org_ids, axis=0)          # (B, H) f32

    # --- Classifier on concat([cls, org]) -> split-weight form (Pallas) ---
    # TODO(synk): Classifier internals unknown; modeled as Linear(2H -> num_class).
    return classifier_head(cls_vec, org_vec,
                           params["cls_wc"], params["cls_wo"], params["cls_b"])


# ------------------------------ parameter init --------------------------------

def init_params(key, *, vocab, max_pos, type_vocab, H, I, num_layers, num_heads,
                head_group, num_orgs, num_classes):
    # Weight matrices stored (in_dim, out_dim) so kernels compute x @ W + b;
    # matmul weights in bf16 (MXU operands), biases / LN params / embedding
    # tables in f32. Attention weights are stored grouped:
    #   Wq/Wk/Wv : (num_heads//g, H, g*head_dim), Wo : (num_heads//g, g*head_dim, H)
    # and the 1/sqrt(head_dim) score scale is folded into Wq (and bq).
    hd = H // num_heads
    g = head_group
    assert num_heads % g == 0
    n_groups = num_heads // g
    scale = 1.0 / (hd ** 0.5)
    keys = iter(jax.random.split(key, 16 + 16 * num_layers))
    std = 0.02

    def nrm(shape, dtype=jnp.float32, mul=1.0):
        return (std * mul * jax.random.normal(next(keys), shape)).astype(dtype)

    params = {
        "word_emb": nrm((vocab, H)),
        "pos_emb": nrm((max_pos, H)),
        "type_emb": nrm((type_vocab, H)),
        "emb_ln_g": jnp.ones((1, H), jnp.float32),
        "emb_ln_b": jnp.zeros((1, H), jnp.float32),
        "org_emb": nrm((num_orgs, H)),
        # classifier weight pre-split into cls-half / org-half (no lane concat)
        "cls_wc": nrm((H, num_classes), jnp.bfloat16),
        "cls_wo": nrm((H, num_classes), jnp.bfloat16),
        "cls_b": jnp.zeros((1, num_classes), jnp.float32),
        "layers": [],
    }
    for _ in range(num_layers):
        layer = {
            "wq": nrm((n_groups, H, g * hd), jnp.bfloat16, mul=scale),  # scale folded
            "bq": jnp.zeros((n_groups, 1, g * hd), jnp.float32),
            "wk": nrm((n_groups, H, g * hd), jnp.bfloat16),
            "bk": jnp.zeros((n_groups, 1, g * hd), jnp.float32),
            "wv": nrm((n_groups, H, g * hd), jnp.bfloat16),
            "bv": jnp.zeros((n_groups, 1, g * hd), jnp.float32),
            "wo": nrm((n_groups, g * hd, H), jnp.bfloat16),
            "bo": jnp.zeros((1, H), jnp.float32),
            "g1": jnp.ones((1, H), jnp.float32),
            "be1": jnp.zeros((1, H), jnp.float32),
            "w1": nrm((H, I), jnp.bfloat16),
            "b1": jnp.zeros((1, I), jnp.float32),
            "w2": nrm((I, H), jnp.bfloat16),
            "b2": jnp.zeros((1, H), jnp.float32),
            "g2": jnp.ones((1, H), jnp.float32),
            "be2": jnp.zeros((1, H), jnp.float32),
        }
        params["layers"].append(layer)
    return params


# ------------------------------------ main -------------------------------------

if __name__ == "__main__":
    B, S, H = 2, 8, 32
    NUM_HEADS, NUM_LAYERS = 2, 2
    INTERMEDIATE = 256
    VOCAB, MAX_POS, TYPE_VOCAB = 100, 64, 2
    NUM_ORGS, NUM_CLASSES = 4, 6

    cfg = _kernel_config()
    head_group = _pick_head_group(NUM_HEADS, cfg["head_group"])

    root = jax.random.PRNGKey(0)
    k_tok, k_org, k_par = jax.random.split(root, 3)

    token_ids = jax.random.randint(k_tok, (B, S), 0, VOCAB, dtype=jnp.int32)
    org_ids = jax.random.randint(k_org, (B,), 0, NUM_ORGS, dtype=jnp.int32)

    params = init_params(k_par, vocab=VOCAB, max_pos=MAX_POS, type_vocab=TYPE_VOCAB,
                         H=H, I=INTERMEDIATE, num_layers=NUM_LAYERS,
                         num_heads=NUM_HEADS, head_group=head_group,
                         num_orgs=NUM_ORGS, num_classes=NUM_CLASSES)

    forward = jax.jit(functools.partial(protbert_organism_classifier_forward,
                                        head_dim=H // NUM_HEADS, cfg=cfg))
    out = forward(token_ids, org_ids, params)
    out = jax.block_until_ready(out)
    assert out.shape == (B, NUM_CLASSES), out.shape
    print("KERNEL_OK")
</pallas_src>

<mosaic_0001>
module attributes {stable_mosaic.version = 11 : i64} {
  func.func @ffn_ln_resident_kernel(%arg0: i32, %arg1: i32, %arg2: memref<1x8x32xbf16, #tpu.memory_space<vmem>>, %arg3: memref<32x256xbf16, #tpu.memory_space<vmem>>, %arg4: memref<1x256xf32, #tpu.memory_space<vmem>>, %arg5: memref<256x32xbf16, #tpu.memory_space<vmem>>, %arg6: memref<1x32xf32, #tpu.memory_space<vmem>>, %arg7: memref<1x32xf32, #tpu.memory_space<vmem>>, %arg8: memref<1x32xf32, #tpu.memory_space<vmem>>, %arg9: memref<1x8x32xbf16, #tpu.memory_space<vmem>>) attributes {dimension_semantics = [#tpu.dimension_semantics<parallel>, #tpu.dimension_semantics<parallel>], iteration_bounds = array<i64: 2, 1>, scalar_prefetch = 0 : i64, scratch_operands = 0 : i64, tpu.core_type = #tpu.core_type<tc>, window_params = [{transform_indices = @transform_0, window_bounds = array<i64: 1, 8, 32>}, {pipeline_mode = #tpu.pipeline_mode<synchronous>, transform_indices = @transform_1, window_bounds = array<i64: 32, 256>}, {pipeline_mode = #tpu.pipeline_mode<synchronous>, transform_indices = @transform_2, window_bounds = array<i64: 1, 256>}, {pipeline_mode = #tpu.pipeline_mode<synchronous>, transform_indices = @transform_3, window_bounds = array<i64: 256, 32>}, {pipeline_mode = #tpu.pipeline_mode<synchronous>, transform_indices = @transform_4, window_bounds = array<i64: 1, 32>}, {pipeline_mode = #tpu.pipeline_mode<synchronous>, transform_indices = @transform_5, window_bounds = array<i64: 1, 32>}, {pipeline_mode = #tpu.pipeline_mode<synchronous>, transform_indices = @transform_6, window_bounds = array<i64: 1, 32>}, {transform_indices = @transform_7, window_bounds = array<i64: 1, 8, 32>}]} {
    %c0 = arith.constant 0 : index
    %c0_0 = arith.constant 0 : index
    %c0_1 = arith.constant 0 : index
    %0 = vector.load %arg2[%c0, %c0_0, %c0_1] : memref<1x8x32xbf16, #tpu.memory_space<vmem>>, vector<1x8x32xbf16>
    %1 = vector.shape_cast %0 : vector<1x8x32xbf16> to vector<8x32xbf16>
    %c0_2 = arith.constant 0 : index
    %c0_3 = arith.constant 0 : index
    %2 = vector.load %arg3[%c0_2, %c0_3] : memref<32x256xbf16, #tpu.memory_space<vmem>>, vector<32x256xbf16>
    %cst = arith.constant dense<0.000000e+00> : vector<8x256xf32>
    %3 = tpu.matmul %1, %2, %cst {dimension_numbers = #tpu.dot_dimension_numbers<[1], [0], [0], [1], [0, 0, 1, 1], [], []>} : vector<8x32xbf16>, vector<32x256xbf16>, vector<8x256xf32> -> vector<8x256xf32>
    %c0_4 = arith.constant 0 : index
    %c0_5 = arith.constant 0 : index
    %4 = vector.load %arg4[%c0_4, %c0_5] : memref<1x256xf32, #tpu.memory_space<vmem>>, vector<1x256xf32>
    %5 = vector.broadcast %4 : vector<1x256xf32> to vector<8x256xf32>
    %6 = arith.addf %3, %5 : vector<8x256xf32>
    %cst_6 = arith.constant 5.000000e-01 : f32
    %7 = vector.broadcast %cst_6 : f32 to vector<8x256xf32>
    %8 = arith.mulf %7, %6 : vector<8x256xf32>
    %cst_7 = arith.constant 4.471500e-02 : f32
    %9 = vector.broadcast %cst_7 : f32 to vector<8x256xf32>
    %10 = arith.mulf %9, %6 : vector<8x256xf32>
    %11 = arith.mulf %10, %6 : vector<8x256xf32>
    %12 = arith.mulf %11, %6 : vector<8x256xf32>
    %13 = arith.addf %6, %12 : vector<8x256xf32>
    %cst_8 = arith.constant 0.797884583 : f32
    %14 = vector.broadcast %cst_8 : f32 to vector<8x256xf32>
    %15 = arith.mulf %14, %13 : vector<8x256xf32>
    %16 = math.tanh %15 : vector<8x256xf32>
    %cst_9 = arith.constant 1.000000e+00 : f32
    %17 = vector.broadcast %cst_9 : f32 to vector<8x256xf32>
    %18 = arith.addf %17, %16 : vector<8x256xf32>
    %19 = arith.mulf %8, %18 : vector<8x256xf32>
    %20 = arith.truncf %19 : vector<8x256xf32> to vector<8x256xbf16>
    %c0_10 = arith.constant 0 : index
    %c0_11 = arith.constant 0 : index
    %21 = vector.load %arg5[%c0_10, %c0_11] : memref<256x32xbf16, #tpu.memory_space<vmem>>, vector<256x32xbf16>
    %cst_12 = arith.constant dense<0.000000e+00> : vector<8x32xf32>
    %22 = tpu.matmul %20, %21, %cst_12 {dimension_numbers = #tpu.dot_dimension_numbers<[1], [0], [0], [1], [0, 0, 1, 1], [], []>} : vector<8x256xbf16>, vector<256x32xbf16>, vector<8x32xf32> -> vector<8x32xf32>
    %23 = arith.extf %1 : vector<8x32xbf16> to vector<8x32xf32>
    %24 = arith.addf %23, %22 : vector<8x32xf32>
    %c0_13 = arith.constant 0 : index
    %c0_14 = arith.constant 0 : index
    %25 = vector.load %arg6[%c0_13, %c0_14] : memref<1x32xf32, #tpu.memory_space<vmem>>, vector<1x32xf32>
    %26 = vector.broadcast %25 : vector<1x32xf32> to vector<8x32xf32>
    %27 = arith.addf %24, %26 : vector<8x32xf32>
    %c0_15 = arith.constant 0 : index
    %c0_16 = arith.constant 0 : index
    %28 = vector.load %arg7[%c0_15, %c0_16] : memref<1x32xf32, #tpu.memory_space<vmem>>, vector<1x32xf32>
    %c0_17 = arith.constant 0 : index
    %c0_18 = arith.constant 0 : index
    %29 = vector.load %arg8[%c0_17, %c0_18] : memref<1x32xf32, #tpu.memory_space<vmem>>, vector<1x32xf32>
    %cst_19 = arith.constant dense<0.000000e+00> : vector<8xf32>
    %30 = vector.multi_reduction <add>, %27, %cst_19 [1] : vector<8x32xf32> to vector<8xf32>
    %31 = vector.shape_cast %30 : vector<8xf32> to vector<8x1xf32>
    %32 = arith.mulf %27, %27 : vector<8x32xf32>
    %cst_20 = arith.constant dense<0.000000e+00> : vector<8xf32>
    %33 = vector.multi_reduction <add>, %32, %cst_20 [1] : vector<8x32xf32> to vector<8xf32>
    %34 = vector.shape_cast %33 : vector<8xf32> to vector<8x1xf32>
    %cst_21 = arith.constant 3.125000e-02 : f32
    %35 = vector.broadcast %cst_21 : f32 to vector<8x1xf32>
    %36 = arith.mulf %31, %35 : vector<8x1xf32>
    %cst_22 = arith.constant 3.125000e-02 : f32
    %37 = vector.broadcast %cst_22 : f32 to vector<8x1xf32>
    %38 = arith.mulf %34, %37 : vector<8x1xf32>
    %39 = arith.mulf %36, %36 : vector<8x1xf32>
    %40 = arith.subf %38, %39 : vector<8x1xf32>
    %41 = vector.broadcast %36 : vector<8x1xf32> to vector<8x32xf32>
    %42 = arith.subf %27, %41 : vector<8x32xf32>
    %cst_23 = arith.constant 9.99999996E-13 : f32
    %43 = vector.broadcast %cst_23 : f32 to vector<8x1xf32>
    %44 = arith.addf %40, %43 : vector<8x1xf32>
    %45 = math.rsqrt %44 : vector<8x1xf32>
    %46 = vector.broadcast %45 : vector<8x1xf32> to vector<8x32xf32>
    %47 = arith.mulf %42, %46 : vector<8x32xf32>
    %48 = vector.broadcast %28 : vector<1x32xf32> to vector<8x32xf32>
    %49 = arith.mulf %47, %48 : vector<8x32xf32>
    %50 = vector.broadcast %29 : vector<1x32xf32> to vector<8x32xf32>
    %51 = arith.addf %49, %50 : vector<8x32xf32>
    %52 = arith.truncf %51 : vector<8x32xf32> to vector<8x32xbf16>
    %c0_24 = arith.constant 0 : index
    %c0_25 = arith.constant 0 : index
    %c0_26 = arith.constant 0 : index
    %53 = vector.load %arg9[%c0_24, %c0_25, %c0_26] : memref<1x8x32xbf16, #tpu.memory_space<vmem>>, vector<1x8x32xbf16>
    %54 = vector.shape_cast %53 : vector<1x8x32xbf16> to vector<8x32xbf16>
    %55 = vector.shape_cast %52 : vector<8x32xbf16> to vector<1x8x32xbf16>
    tpu.vector_store %arg9[%c0_24, %c0_25, %c0_26], %55 {strides = array<i32>} : memref<1x8x32xbf16, #tpu.memory_space<vmem>>, vector<1x8x32xbf16>,
    return
  }
  func.func @transform_0(%arg0: i32, %arg1: i32) -> (i32, i32, i32) {
    %c0_i32 = arith.constant 0 : i32
    %c0_i32_0 = arith.constant 0 : i32
    return %arg0, %arg1, %c0_i32 : i32, i32, i32
  }
  func.func @transform_1(%arg0: i32, %arg1: i32) -> (i32, i32) {
    %c0_i32 = arith.constant 0 : i32
    %c0_i32_0 = arith.constant 0 : i32
    %c0_i32_1 = arith.constant 0 : i32
    return %c0_i32, %c0_i32_0 : i32, i32
  }
  func.func @transform_2(%arg0: i32, %arg1: i32) -> (i32, i32) {
    %c0_i32 = arith.constant 0 : i32
    %c0_i32_0 = arith.constant 0 : i32
    %c0_i32_1 = arith.constant 0 : i32
    return %c0_i32, %c0_i32_0 : i32, i32
  }
  func.func @transform_3(%arg0: i32, %arg1: i32) -> (i32, i32) {
    %c0_i32 = arith.constant 0 : i32
    %c0_i32_0 = arith.constant 0 : i32
    %c0_i32_1 = arith.constant 0 : i32
    return %c0_i32, %c0_i32_0 : i32, i32
  }
  func.func @transform_4(%arg0: i32, %arg1: i32) -> (i32, i32) {
    %c0_i32 = arith.constant 0 : i32
    %c0_i32_0 = arith.constant 0 : i32
    %c0_i32_1 = arith.constant 0 : i32
    return %c0_i32, %c0_i32_0 : i32, i32
  }
  func.func @transform_5(%arg0: i32, %arg1: i32) -> (i32, i32) {
    %c0_i32 = arith.constant 0 : i32
    %c0_i32_0 = arith.constant 0 : i32
    %c0_i32_1 = arith.constant 0 : i32
    return %c0_i32, %c0_i32_0 : i32, i32
  }
  func.func @transform_6(%arg0: i32, %arg1: i32) -> (i32, i32) {
    %c0_i32 = arith.constant 0 : i32
    %c0_i32_0 = arith.constant 0 : i32
    %c0_i32_1 = arith.constant 0 : i32
    return %c0_i32, %c0_i32_0 : i32, i32
  }
  func.func @transform_7(%arg0: i32, %arg1: i32) -> (i32, i32, i32) {
    %c0_i32 = arith.constant 0 : i32
    %c0_i32_0 = arith.constant 0 : i32
    return %arg0, %arg1, %c0_i32 : i32, i32, i32
  }
}

module attributes {stable_mosaic.version = 11 : i64} {
  func.func @embed_ln_kernel(%arg0: i32, %arg1: i32, %arg2: memref<1x8x32xf32, #tpu.memory_space<vmem>>, %arg3: memref<8x32xf32, #tpu.memory_space<vmem>>, %arg4: memref<1x32xf32, #tpu.memory_space<vmem>>, %arg5: memref<1x32xf32, #tpu.memory_space<vmem>>, %arg6: memref<1x32xf32, #tpu.memory_space<vmem>>, %arg7: memref<1x8x32xbf16, #tpu.memory_space<vmem>>) attributes {dimension_semantics = [#tpu.dimension_semantics<parallel>, #tpu.dimension_semantics<parallel>], iteration_bounds = array<i64: 2, 1>, scalar_prefetch = 0 : i64, scratch_operands = 0 : i64, tpu.core_type = #tpu.core_type<tc>, window_params = [{transform_indices = @transform_0, window_bounds = array<i64: 1, 8, 32>}, {transform_indices = @transform_1, window_bounds = array<i64: 8, 32>}, {pipeline_mode = #tpu.pipeline_mode<synchronous>, transform_indices = @transform_2, window_bounds = array<i64: 1, 32>}, {pipeline_mode = #tpu.pipeline_mode<synchronous>, transform_indices = @transform_3, window_bounds = array<i64: 1, 32>}, {pipeline_mode = #tpu.pipeline_mode<synchronous>, transform_indices = @transform_4, window_bounds = array<i64: 1, 32>}, {transform_indices = @transform_5, window_bounds = array<i64: 1, 8, 32>}]} {
    %c0 = arith.constant 0 : index
    %c0_0 = arith.constant 0 : index
    %c0_1 = arith.constant 0 : index
    %0 = vector.load %arg2[%c0, %c0_0, %c0_1] : memref<1x8x32xf32, #tpu.memory_space<vmem>>, vector<1x8x32xf32>
    %1 = vector.shape_cast %0 : vector<1x8x32xf32> to vector<8x32xf32>
    %c0_2 = arith.constant 0 : index
    %c0_3 = arith.constant 0 : index
    %2 = vector.load %arg3[%c0_2, %c0_3] : memref<8x32xf32, #tpu.memory_space<vmem>>, vector<8x32xf32>
    %3 = arith.addf %1, %2 : vector<8x32xf32>
    %c0_4 = arith.constant 0 : index
    %c0_5 = arith.constant 0 : index
    %4 = vector.load %arg4[%c0_4, %c0_5] : memref<1x32xf32, #tpu.memory_space<vmem>>, vector<1x32xf32>
    %5 = vector.broadcast %4 : vector<1x32xf32> to vector<8x32xf32>
    %6 = arith.addf %3, %5 : vector<8x32xf32>
    %c0_6 = arith.constant 0 : index
    %c0_7 = arith.constant 0 : index
    %7 = vector.load %arg5[%c0_6, %c0_7] : memref<1x32xf32, #tpu.memory_space<vmem>>, vector<1x32xf32>
    %c0_8 = arith.constant 0 : index
    %c0_9 = arith.constant 0 : index
    %8 = vector.load %arg6[%c0_8, %c0_9] : memref<1x32xf32, #tpu.memory_space<vmem>>, vector<1x32xf32>
    %cst = arith.constant dense<0.000000e+00> : vector<8xf32>
    %9 = vector.multi_reduction <add>, %6, %cst [1] : vector<8x32xf32> to vector<8xf32>
    %10 = vector.shape_cast %9 : vector<8xf32> to vector<8x1xf32>
    %11 = arith.mulf %6, %6 : vector<8x32xf32>
    %cst_10 = arith.constant dense<0.000000e+00> : vector<8xf32>
    %12 = vector.multi_reduction <add>, %11, %cst_10 [1] : vector<8x32xf32> to vector<8xf32>
    %13 = vector.shape_cast %12 : vector<8xf32> to vector<8x1xf32>
    %cst_11 = arith.constant 3.125000e-02 : f32
    %14 = vector.broadcast %cst_11 : f32 to vector<8x1xf32>
    %15 = arith.mulf %10, %14 : vector<8x1xf32>
    %cst_12 = arith.constant 3.125000e-02 : f32
    %16 = vector.broadcast %cst_12 : f32 to vector<8x1xf32>
    %17 = arith.mulf %13, %16 : vector<8x1xf32>
    %18 = arith.mulf %15, %15 : vector<8x1xf32>
    %19 = arith.subf %17, %18 : vector<8x1xf32>
    %20 = vector.broadcast %15 : vector<8x1xf32> to vector<8x32xf32>
    %21 = arith.subf %6, %20 : vector<8x32xf32>
    %cst_13 = arith.constant 9.99999996E-13 : f32
    %22 = vector.broadcast %cst_13 : f32 to vector<8x1xf32>
    %23 = arith.addf %19, %22 : vector<8x1xf32>
    %24 = math.rsqrt %23 : vector<8x1xf32>
    %25 = vector.broadcast %24 : vector<8x1xf32> to vector<8x32xf32>
    %26 = arith.mulf %21, %25 : vector<8x32xf32>
    %27 = vector.broadcast %7 : vector<1x32xf32> to vector<8x32xf32>
    %28 = arith.mulf %26, %27 : vector<8x32xf32>
    %29 = vector.broadcast %8 : vector<1x32xf32> to vector<8x32xf32>
    %30 = arith.addf %28, %29 : vector<8x32xf32>
    %31 = arith.truncf %30 : vector<8x32xf32> to vector<8x32xbf16>
    %c0_14 = arith.constant 0 : index
    %c0_15 = arith.constant 0 : index
    %c0_16 = arith.constant 0 : index
    %32 = vector.load %arg7[%c0_14, %c0_15, %c0_16] : memref<1x8x32xbf16, #tpu.memory_space<vmem>>, vector<1x8x32xbf16>
    %33 = vector.shape_cast %32 : vector<1x8x32xbf16> to vector<8x32xbf16>
    %34 = vector.shape_cast %31 : vector<8x32xbf16> to vector<1x8x32xbf16>
    tpu.vector_store %arg7[%c0_14, %c0_15, %c0_16], %34 {strides = array<i32>} : memref<1x8x32xbf16, #tpu.memory_space<vmem>>, vector<1x8x32xbf16>,
    return
  }
  func.func @transform_0(%arg0: i32, %arg1: i32) -> (i32, i32, i32) {
    %c0_i32 = arith.constant 0 : i32
    %c0_i32_0 = arith.constant 0 : i32
    return %arg0, %arg1, %c0_i32 : i32, i32, i32
  }
  func.func @transform_1(%arg0: i32, %arg1: i32) -> (i32, i32) {
    %c0_i32 = arith.constant 0 : i32
    %c0_i32_0 = arith.constant 0 : i32
    return %arg1, %c0_i32 : i32, i32
  }
  func.func @transform_2(%arg0: i32, %arg1: i32) -> (i32, i32) {
    %c0_i32 = arith.constant 0 : i32
    %c0_i32_0 = arith.constant 0 : i32
    %c0_i32_1 = arith.constant 0 : i32
    return %c0_i32, %c0_i32_0 : i32, i32
  }
  func.func @transform_3(%arg0: i32, %arg1: i32) -> (i32, i32) {
    %c0_i32 = arith.constant 0 : i32
    %c0_i32_0 = arith.constant 0 : i32
    %c0_i32_1 = arith.constant 0 : i32
    return %c0_i32, %c0_i32_0 : i32, i32
  }
  func.func @transform_4(%arg0: i32, %arg1: i32) -> (i32, i32) {
    %c0_i32 = arith.constant 0 : i32
    %c0_i32_0 = arith.constant 0 : i32
    %c0_i32_1 = arith.constant 0 : i32
    return %c0_i32, %c0_i32_0 : i32, i32
  }
  func.func @transform_5(%arg0: i32, %arg1: i32) -> (i32, i32, i32) {
    %c0_i32 = arith.constant 0 : i32
    %c0_i32_0 = arith.constant 0 : i32
    return %arg0, %arg1, %c0_i32 : i32, i32, i32
  }
}

module attributes {stable_mosaic.version = 11 : i64} {
  func.func @attention_ln_kernel(%arg0: i32, %arg1: i32, %arg2: i32, %arg3: memref<1x8x32xbf16, #tpu.memory_space<vmem>>, %arg4: memref<1x8x32xbf16, #tpu.memory_space<vmem>>, %arg5: memref<1x32x32xbf16, #tpu.memory_space<vmem>>, %arg6: memref<1x1x32xf32, #tpu.memory_space<vmem>>, %arg7: memref<1x32x32xbf16, #tpu.memory_space<vmem>>, %arg8: memref<1x1x32xf32, #tpu.memory_space<vmem>>, %arg9: memref<1x32x32xbf16, #tpu.memory_space<vmem>>, %arg10: memref<1x1x32xf32, #tpu.memory_space<vmem>>, %arg11: memref<1x32x32xbf16, #tpu.memory_space<vmem>>, %arg12: memref<1x32xf32, #tpu.memory_space<vmem>>, %arg13: memref<1x32xf32, #tpu.memory_space<vmem>>, %arg14: memref<1x32xf32, #tpu.memory_space<vmem>>, %arg15: memref<1x8x32xbf16, #tpu.memory_space<vmem>>, %arg16: memref<8x32xf32, #tpu.memory_space<vmem>>) attributes {dimension_semantics = [#tpu.dimension_semantics<parallel>, #tpu.dimension_semantics<parallel>, #tpu.dimension_semantics<arbitrary>], iteration_bounds = array<i64: 2, 1, 1>, scalar_prefetch = 0 : i64, scratch_operands = 1 : i64, tpu.core_type = #tpu.core_type<tc>, window_params = [{transform_indices = @transform_0, window_bounds = array<i64: 1, 8, 32>}, {transform_indices = @transform_1, window_bounds = array<i64: 1, 8, 32>}, {transform_indices = @transform_2, window_bounds = array<i64: 1, 32, 32>}, {transform_indices = @transform_3, window_bounds = array<i64: 1, 1, 32>}, {transform_indices = @transform_4, window_bounds = array<i64: 1, 32, 32>}, {transform_indices = @transform_5, window_bounds = array<i64: 1, 1, 32>}, {transform_indices = @transform_6, window_bounds = array<i64: 1, 32, 32>}, {transform_indices = @transform_7, window_bounds = array<i64: 1, 1, 32>}, {transform_indices = @transform_8, window_bounds = array<i64: 1, 32, 32>}, {pipeline_mode = #tpu.pipeline_mode<synchronous>, transform_indices = @transform_9, window_bounds = array<i64: 1, 32>}, {pipeline_mode = #tpu.pipeline_mode<synchronous>, transform_indices = @transform_10, window_bounds = array<i64: 1, 32>}, {pipeline_mode = #tpu.pipeline_mode<synchronous>, transform_indices = @transform_11, window_bounds = array<i64: 1, 32>}, {transform_indices = @transform_12, window_bounds = array<i64: 1, 8, 32>}]} {
    %c0_i32 = arith.constant 0 : i32
    %0 = arith.cmpi eq, %arg2, %c0_i32 : i32
    %1 = arith.extui %0 : i1 to i32
    %c0_i32_0 = arith.constant 0 : i32
    %2 = arith.cmpi ne, %1, %c0_i32_0 : i32
    scf.if %2 {
      %cst_49 = arith.constant 0.000000e+00 : f32
      %83 = vector.broadcast %cst_49 : f32 to vector<8x32xf32>
      %c0_50 = arith.constant 0 : index
      %c0_51 = arith.constant 0 : index
      %84 = vector.load %arg16[%c0_50, %c0_51] : memref<8x32xf32, #tpu.memory_space<vmem>>, vector<8x32xf32>
      tpu.vector_store %arg16[%c0_50, %c0_51], %83 {strides = array<i32>} : memref<8x32xf32, #tpu.memory_space<vmem>>, vector<8x32xf32>,
    } else {
    }
    %c0 = arith.constant 0 : index
    %c0_1 = arith.constant 0 : index
    %c0_2 = arith.constant 0 : index
    %3 = vector.load %arg3[%c0, %c0_1, %c0_2] : memref<1x8x32xbf16, #tpu.memory_space<vmem>>, vector<1x8x32xbf16>
    %4 = vector.shape_cast %3 : vector<1x8x32xbf16> to vector<8x32xbf16>
    %c0_3 = arith.constant 0 : index
    %c0_4 = arith.constant 0 : index
    %c0_5 = arith.constant 0 : index
    %5 = vector.load %arg4[%c0_3, %c0_4, %c0_5] : memref<1x8x32xbf16, #tpu.memory_space<vmem>>, vector<1x8x32xbf16>
    %6 = vector.shape_cast %5 : vector<1x8x32xbf16> to vector<8x32xbf16>
    %c0_6 = arith.constant 0 : index
    %c0_7 = arith.constant 0 : index
    %c0_8 = arith.constant 0 : index
    %7 = vector.load %arg5[%c0_6, %c0_7, %c0_8] : memref<1x32x32xbf16, #tpu.memory_space<vmem>>, vector<1x32x32xbf16>
    %8 = vector.shape_cast %7 : vector<1x32x32xbf16> to vector<32x32xbf16>
    %c0_9 = arith.constant 0 : index
    %c0_10 = arith.constant 0 : index
    %c0_11 = arith.constant 0 : index
    %9 = vector.load %arg7[%c0_9, %c0_10, %c0_11] : memref<1x32x32xbf16, #tpu.memory_space<vmem>>, vector<1x32x32xbf16>
    %10 = vector.shape_cast %9 : vector<1x32x32xbf16> to vector<32x32xbf16>
    %c0_12 = arith.constant 0 : index
    %c0_13 = arith.constant 0 : index
    %c0_14 = arith.constant 0 : index
    %11 = vector.load %arg9[%c0_12, %c0_13, %c0_14] : memref<1x32x32xbf16, #tpu.memory_space<vmem>>, vector<1x32x32xbf16>
    %12 = vector.shape_cast %11 : vector<1x32x32xbf16> to vector<32x32xbf16>
    %c0_15 = arith.constant 0 : index
    %c0_16 = arith.constant 0 : index
    %c0_17 = arith.constant 0 : index
    %13 = vector.load %arg11[%c0_15, %c0_16, %c0_17] : memref<1x32x32xbf16, #tpu.memory_space<vmem>>, vector<1x32x32xbf16>
    %14 = vector.shape_cast %13 : vector<1x32x32xbf16> to vector<32x32xbf16>
    %cst = arith.constant dense<0.000000e+00> : vector<8x32xf32>
    %15 = tpu.matmul %4, %8, %cst {dimension_numbers = #tpu.dot_dimension_numbers<[1], [0], [0], [1], [0, 0, 1, 1], [], []>} : vector<8x32xbf16>, vector<32x32xbf16>, vector<8x32xf32> -> vector<8x32xf32>
    %c0_18 = arith.constant 0 : index
    %c0_19 = arith.constant 0 : index
    %c0_20 = arith.constant 0 : index
    %16 = vector.load %arg6[%c0_18, %c0_19, %c0_20] : memref<1x1x32xf32, #tpu.memory_space<vmem>>, vector<1x1x32xf32>
    %17 = vector.shape_cast %16 : vector<1x1x32xf32> to vector<1x32xf32>
    %18 = vector.broadcast %17 : vector<1x32xf32> to vector<8x32xf32>
    %19 = arith.addf %15, %18 : vector<8x32xf32>
    %cst_21 = arith.constant dense<0.000000e+00> : vector<8x32xf32>
    %20 = tpu.matmul %6, %10, %cst_21 {dimension_numbers = #tpu.dot_dimension_numbers<[1], [0], [0], [1], [0, 0, 1, 1], [], []>} : vector<8x32xbf16>, vector<32x32xbf16>, vector<8x32xf32> -> vector<8x32xf32>
    %c0_22 = arith.constant 0 : index
    %c0_23 = arith.constant 0 : index
    %c0_24 = arith.constant 0 : index
    %21 = vector.load %arg8[%c0_22, %c0_23, %c0_24] : memref<1x1x32xf32, #tpu.memory_space<vmem>>, vector<1x1x32xf32>
    %22 = vector.shape_cast %21 : vector<1x1x32xf32> to vector<1x32xf32>
    %23 = vector.broadcast %22 : vector<1x32xf32> to vector<8x32xf32>
    %24 = arith.addf %20, %23 : vector<8x32xf32>
    %cst_25 = arith.constant dense<0.000000e+00> : vector<8x32xf32>
    %25 = tpu.matmul %6, %12, %cst_25 {dimension_numbers = #tpu.dot_dimension_numbers<[1], [0], [0], [1], [0, 0, 1, 1], [], []>} : vector<8x32xbf16>, vector<32x32xbf16>, vector<8x32xf32> -> vector<8x32xf32>
    %c0_26 = arith.constant 0 : index
    %c0_27 = arith.constant 0 : index
    %c0_28 = arith.constant 0 : index
    %26 = vector.load %arg10[%c0_26, %c0_27, %c0_28] : memref<1x1x32xf32, #tpu.memory_space<vmem>>, vector<1x1x32xf32>
    %27 = vector.shape_cast %26 : vector<1x1x32xf32> to vector<1x32xf32>
    %28 = vector.broadcast %27 : vector<1x32xf32> to vector<8x32xf32>
    %29 = arith.addf %25, %28 : vector<8x32xf32>
    %30 = vector.extract_strided_slice %19 {offsets = [0, 0], sizes = [8, 16], strides = [1, 1]} : vector<8x32xf32> to vector<8x16xf32>
    %31 = arith.truncf %30 : vector<8x16xf32> to vector<8x16xbf16>
    %32 = vector.extract_strided_slice %24 {offsets = [0, 0], sizes = [8, 16], strides = [1, 1]} : vector<8x32xf32> to vector<8x16xf32>
    %33 = arith.truncf %32 : vector<8x16xf32> to vector<8x16xbf16>
    %34 = vector.extract_strided_slice %29 {offsets = [0, 0], sizes = [8, 16], strides = [1, 1]} : vector<8x32xf32> to vector<8x16xf32>
    %35 = arith.truncf %34 : vector<8x16xf32> to vector<8x16xbf16>
    %cst_29 = arith.constant dense<0.000000e+00> : vector<8x8xf32>
    %36 = tpu.matmul %31, %33, %cst_29 {dimension_numbers = #tpu.dot_dimension_numbers<[1], [1], [0], [0], [0, 0, 1, 0], [], []>} : vector<8x16xbf16>, vector<8x16xbf16>, vector<8x8xf32> -> vector<8x8xf32>
    %cst_30 = arith.constant dense<0xFF800000> : vector<8xf32>
    %37 = vector.multi_reduction <maximumf>, %36, %cst_30 [1] : vector<8x8xf32> to vector<8xf32>
    %38 = vector.shape_cast %37 : vector<8xf32> to vector<8x1xf32>
    %39 = vector.broadcast %38 : vector<8x1xf32> to vector<8x8xf32>
    %40 = arith.subf %36, %39 : vector<8x8xf32>
    %41 = math.exp %40 : vector<8x8xf32>
    %cst_31 = arith.constant dense<0.000000e+00> : vector<8xf32>
    %42 = vector.multi_reduction <add>, %41, %cst_31 [1] : vector<8x8xf32> to vector<8xf32>
    %43 = vector.shape_cast %42 : vector<8xf32> to vector<8x1xf32>
    %44 = arith.truncf %41 : vector<8x8xf32> to vector<8x8xbf16>
    %cst_32 = arith.constant dense<0.000000e+00> : vector<8x16xf32>
    %45 = tpu.matmul %44, %35, %cst_32 {dimension_numbers = #tpu.dot_dimension_numbers<[1], [0], [0], [1], [0, 0, 1, 1], [], []>} : vector<8x8xbf16>, vector<8x16xbf16>, vector<8x16xf32> -> vector<8x16xf32>
    %46 = tpu.reciprocal %43 {approx = true} : vector<8x1xf32> -> vector<8x1xf32>
    %47 = vector.broadcast %46 : vector<8x1xf32> to vector<8x16xf32>
    %48 = arith.mulf %45, %47 : vector<8x16xf32>
    %c0_33 = arith.constant 0 : index
    %c0_34 = arith.constant 0 : index
    %49 = vector.load %arg16[%c0_33, %c0_34] : memref<8x32xf32, #tpu.memory_space<vmem>>, vector<8x32xf32>
    %50 = arith.truncf %48 : vector<8x16xf32> to vector<8x16xbf16>
    %51 = vector.extract_strided_slice %14 {offsets = [0, 0], sizes = [16, 32], strides = [1, 1]} : vector<32x32xbf16> to vector<16x32xbf16>
    %cst_35 = arith.constant dense<0.000000e+00> : vector<8x32xf32>
    %52 = tpu.matmul %50, %51, %cst_35 {dimension_numbers = #tpu.dot_dimension_numbers<[1], [0], [0], [1], [0, 0, 1, 1], [], []>} : vector<8x16xbf16>, vector<16x32xbf16>, vector<8x32xf32> -> vector<8x32xf32>
    %53 = arith.addf %49, %52 : vector<8x32xf32>
    %c0_36 = arith.constant 0 : index
    %c0_37 = arith.constant 0 : index
    %54 = vector.load %arg16[%c0_36, %c0_37] : memref<8x32xf32, #tpu.memory_space<vmem>>, vector<8x32xf32>
    tpu.vector_store %arg16[%c0_36, %c0_37], %53 {strides = array<i32>} : memref<8x32xf32, #tpu.memory_space<vmem>>, vector<8x32xf32>,
    %55 = vector.extract_strided_slice %19 {offsets = [0, 16], sizes = [8, 16], strides = [1, 1]} : vector<8x32xf32> to vector<8x16xf32>
    %56 = arith.truncf %55 : vector<8x16xf32> to vector<8x16xbf16>
    %57 = vector.extract_strided_slice %24 {offsets = [0, 16], sizes = [8, 16], strides = [1, 1]} : vector<8x32xf32> to vector<8x16xf32>
    %58 = arith.truncf %57 : vector<8x16xf32> to vector<8x16xbf16>
    %59 = vector.extract_strided_slice %29 {offsets = [0, 16], sizes = [8, 16], strides = [1, 1]} : vector<8x32xf32> to vector<8x16xf32>
    %60 = arith.truncf %59 : vector<8x16xf32> to vector<8x16xbf16>
    %cst_38 = arith.constant dense<0.000000e+00> : vector<8x8xf32>
    %61 = tpu.matmul %56, %58, %cst_38 {dimension_numbers = #tpu.dot_dimension_numbers<[1], [1], [0], [0], [0, 0, 1, 0], [], []>} : vector<8x16xbf16>, vector<8x16xbf16>, vector<8x8xf32> -> vector<8x8xf32>
    %cst_39 = arith.constant dense<0xFF800000> : vector<8xf32>
    %62 = vector.multi_reduction <maximumf>, %61, %cst_39 [1] : vector<8x8xf32> to vector<8xf32>
    %63 = vector.shape_cast %62 : vector<8xf32> to vector<8x1xf32>
    %64 = vector.broadcast %63 : vector<8x1xf32> to vector<8x8xf32>
    %65 = arith.subf %61, %64 : vector<8x8xf32>
    %66 = math.exp %65 : vector<8x8xf32>
    %cst_40 = arith.constant dense<0.000000e+00> : vector<8xf32>
    %67 = vector.multi_reduction <add>, %66, %cst_40 [1] : vector<8x8xf32> to vector<8xf32>
    %68 = vector.shape_cast %67 : vector<8xf32> to vector<8x1xf32>
    %69 = arith.truncf %66 : vector<8x8xf32> to vector<8x8xbf16>
    %cst_41 = arith.constant dense<0.000000e+00> : vector<8x16xf32>
    %70 = tpu.matmul %69, %60, %cst_41 {dimension_numbers = #tpu.dot_dimension_numbers<[1], [0], [0], [1], [0, 0, 1, 1], [], []>} : vector<8x8xbf16>, vector<8x16xbf16>, vector<8x16xf32> -> vector<8x16xf32>
    %71 = tpu.reciprocal %68 {approx = true} : vector<8x1xf32> -> vector<8x1xf32>
    %72 = vector.broadcast %71 : vector<8x1xf32> to vector<8x16xf32>
    %73 = arith.mulf %70, %72 : vector<8x16xf32>
    %c0_42 = arith.constant 0 : index
    %c0_43 = arith.constant 0 : index
    %74 = vector.load %arg16[%c0_42, %c0_43] : memref<8x32xf32, #tpu.memory_space<vmem>>, vector<8x32xf32>
    %75 = arith.truncf %73 : vector<8x16xf32> to vector<8x16xbf16>
    %76 = vector.extract_strided_slice %14 {offsets = [16, 0], sizes = [16, 32], strides = [1, 1]} : vector<32x32xbf16> to vector<16x32xbf16>
    %cst_44 = arith.constant dense<0.000000e+00> : vector<8x32xf32>
    %77 = tpu.matmul %75, %76, %cst_44 {dimension_numbers = #tpu.dot_dimension_numbers<[1], [0], [0], [1], [0, 0, 1, 1], [], []>} : vector<8x16xbf16>, vector<16x32xbf16>, vector<8x32xf32> -> vector<8x32xf32>
    %78 = arith.addf %74, %77 : vector<8x32xf32>
    %c0_45 = arith.constant 0 : index
    %c0_46 = arith.constant 0 : index
    %79 = vector.load %arg16[%c0_45, %c0_46] : memref<8x32xf32, #tpu.memory_space<vmem>>, vector<8x32xf32>
    tpu.vector_store %arg16[%c0_45, %c0_46], %78 {strides = array<i32>} : memref<8x32xf32, #tpu.memory_space<vmem>>, vector<8x32xf32>,
    %c0_i32_47 = arith.constant 0 : i32
    %80 = arith.cmpi eq, %arg2, %c0_i32_47 : i32
    %81 = arith.extui %80 : i1 to i32
    %c0_i32_48 = arith.constant 0 : i32
    %82 = arith.cmpi ne, %81, %c0_i32_48 : i32
    scf.if %82 {
      %c0_49 = arith.constant 0 : index
      %c0_50 = arith.constant 0 : index
      %83 = vector.load %arg16[%c0_49, %c0_50] : memref<8x32xf32, #tpu.memory_space<vmem>>, vector<8x32xf32>
      %c0_51 = arith.constant 0 : index
      %c0_52 = arith.constant 0 : index
      %84 = vector.load %arg12[%c0_51, %c0_52] : memref<1x32xf32, #tpu.memory_space<vmem>>, vector<1x32xf32>
      %85 = vector.broadcast %84 : vector<1x32xf32> to vector<8x32xf32>
      %86 = arith.addf %83, %85 : vector<8x32xf32>
      %87 = arith.extf %4 : vector<8x32xbf16> to vector<8x32xf32>
      %88 = arith.addf %87, %86 : vector<8x32xf32>
      %c0_53 = arith.constant 0 : index
      %c0_54 = arith.constant 0 : index
      %89 = vector.load %arg13[%c0_53, %c0_54] : memref<1x32xf32, #tpu.memory_space<vmem>>, vector<1x32xf32>
      %c0_55 = arith.constant 0 : index
      %c0_56 = arith.constant 0 : index
      %90 = vector.load %arg14[%c0_55, %c0_56] : memref<1x32xf32, #tpu.memory_space<vmem>>, vector<1x32xf32>
      %cst_57 = arith.constant dense<0.000000e+00> : vector<8xf32>
      %91 = vector.multi_reduction <add>, %88, %cst_57 [1] : vector<8x32xf32> to vector<8xf32>
      %92 = vector.shape_cast %91 : vector<8xf32> to vector<8x1xf32>
      %93 = arith.mulf %88, %88 : vector<8x32xf32>
      %cst_58 = arith.constant dense<0.000000e+00> : vector<8xf32>
      %94 = vector.multi_reduction <add>, %93, %cst_58 [1] : vector<8x32xf32> to vector<8xf32>
      %95 = vector.shape_cast %94 : vector<8xf32> to vector<8x1xf32>
      %cst_59 = arith.constant 3.125000e-02 : f32
      %96 = vector.broadcast %cst_59 : f32 to vector<8x1xf32>
      %97 = arith.mulf %92, %96 : vector<8x1xf32>
      %cst_60 = arith.constant 3.125000e-02 : f32
      %98 = vector.broadcast %cst_60 : f32 to vector<8x1xf32>
      %99 = arith.mulf %95, %98 : vector<8x1xf32>
      %100 = arith.mulf %97, %97 : vector<8x1xf32>
      %101 = arith.subf %99, %100 : vector<8x1xf32>
      %102 = vector.broadcast %97 : vector<8x1xf32> to vector<8x32xf32>
      %103 = arith.subf %88, %102 : vector<8x32xf32>
      %cst_61 = arith.constant 9.99999996E-13 : f32
      %104 = vector.broadcast %cst_61 : f32 to vector<8x1xf32>
      %105 = arith.addf %101, %104 : vector<8x1xf32>
      %106 = math.rsqrt %105 : vector<8x1xf32>
      %107 = vector.broadcast %106 : vector<8x1xf32> to vector<8x32xf32>
      %108 = arith.mulf %103, %107 : vector<8x32xf32>
      %109 = vector.broadcast %89 : vector<1x32xf32> to vector<8x32xf32>
      %110 = arith.mulf %108, %109 : vector<8x32xf32>
      %111 = vector.broadcast %90 : vector<1x32xf32> to vector<8x32xf32>
      %112 = arith.addf %110, %111 : vector<8x32xf32>
      %113 = arith.truncf %112 : vector<8x32xf32> to vector<8x32xbf16>
      %c0_62 = arith.constant 0 : index
      %c0_63 = arith.constant 0 : index
      %c0_64 = arith.constant 0 : index
      %114 = vector.load %arg15[%c0_62, %c0_63, %c0_64] : memref<1x8x32xbf16, #tpu.memory_space<vmem>>, vector<1x8x32xbf16>
      %115 = vector.shape_cast %114 : vector<1x8x32xbf16> to vector<8x32xbf16>
      %116 = vector.shape_cast %113 : vector<8x32xbf16> to vector<1x8x32xbf16>
      tpu.vector_store %arg15[%c0_62, %c0_63, %c0_64], %116 {strides = array<i32>} : memref<1x8x32xbf16, #tpu.memory_space<vmem>>, vector<1x8x32xbf16>,
    } else {
    }
    return
  }
  func.func @transform_0(%arg0: i32, %arg1: i32, %arg2: i32) -> (i32, i32, i32) {
    %c0_i32 = arith.constant 0 : i32
    %c0_i32_0 = arith.constant 0 : i32
    return %arg0, %arg1, %c0_i32 : i32, i32, i32
  }
  func.func @transform_1(%arg0: i32, %arg1: i32, %arg2: i32) -> (i32, i32, i32) {
    %c0_i32 = arith.constant 0 : i32
    %c0_i32_0 = arith.constant 0 : i32
    %c0_i32_1 = arith.constant 0 : i32
    return %arg0, %c0_i32, %c0_i32_0 : i32, i32, i32
  }
  func.func @transform_2(%arg0: i32, %arg1: i32, %arg2: i32) -> (i32, i32, i32) {
    %c0_i32 = arith.constant 0 : i32
    %c0_i32_0 = arith.constant 0 : i32
    %c0_i32_1 = arith.constant 0 : i32
    return %arg2, %c0_i32, %c0_i32_0 : i32, i32, i32
  }
  func.func @transform_3(%arg0: i32, %arg1: i32, %arg2: i32) -> (i32, i32, i32) {
    %c0_i32 = arith.constant 0 : i32
    %c0_i32_0 = arith.constant 0 : i32
    %c0_i32_1 = arith.constant 0 : i32
    return %arg2, %c0_i32, %c0_i32_0 : i32, i32, i32
  }
  func.func @transform_4(%arg0: i32, %arg1: i32, %arg2: i32) -> (i32, i32, i32) {
    %c0_i32 = arith.constant 0 : i32
    %c0_i32_0 = arith.constant 0 : i32
    %c0_i32_1 = arith.constant 0 : i32
    return %arg2, %c0_i32, %c0_i32_0 : i32, i32, i32
  }
  func.func @transform_5(%arg0: i32, %arg1: i32, %arg2: i32) -> (i32, i32, i32) {
    %c0_i32 = arith.constant 0 : i32
    %c0_i32_0 = arith.constant 0 : i32
    %c0_i32_1 = arith.constant 0 : i32
    return %arg2, %c0_i32, %c0_i32_0 : i32, i32, i32
  }
  func.func @transform_6(%arg0: i32, %arg1: i32, %arg2: i32) -> (i32, i32, i32) {
    %c0_i32 = arith.constant 0 : i32
    %c0_i32_0 = arith.constant 0 : i32
    %c0_i32_1 = arith.constant 0 : i32
    return %arg2, %c0_i32, %c0_i32_0 : i32, i32, i32
  }
  func.func @transform_7(%arg0: i32, %arg1: i32, %arg2: i32) -> (i32, i32, i32) {
    %c0_i32 = arith.constant 0 : i32
    %c0_i32_0 = arith.constant 0 : i32
    %c0_i32_1 = arith.constant 0 : i32
    return %arg2, %c0_i32, %c0_i32_0 : i32, i32, i32
  }
  func.func @transform_8(%arg0: i32, %arg1: i32, %arg2: i32) -> (i32, i32, i32) {
    %c0_i32 = arith.constant 0 : i32
    %c0_i32_0 = arith.constant 0 : i32
    %c0_i32_1 = arith.constant 0 : i32
    return %arg2, %c0_i32, %c0_i32_0 : i32, i32, i32
  }
  func.func @transform_9(%arg0: i32, %arg1: i32, %arg2: i32) -> (i32, i32) {
    %c0_i32 = arith.constant 0 : i32
    %c0_i32_0 = arith.constant 0 : i32
    %c0_i32_1 = arith.constant 0 : i32
    return %c0_i32, %c0_i32_0 : i32, i32
  }
  func.func @transform_10(%arg0: i32, %arg1: i32, %arg2: i32) -> (i32, i32) {
    %c0_i32 = arith.constant 0 : i32
    %c0_i32_0 = arith.constant 0 : i32
    %c0_i32_1 = arith.constant 0 : i32
    return %c0_i32, %c0_i32_0 : i32, i32
  }
  func.func @transform_11(%arg0: i32, %arg1: i32, %arg2: i32) -> (i32, i32) {
    %c0_i32 = arith.constant 0 : i32
    %c0_i32_0 = arith.constant 0 : i32
    %c0_i32_1 = arith.constant 0 : i32
    return %c0_i32, %c0_i32_0 : i32, i32
  }
  func.func @transform_12(%arg0: i32, %arg1: i32, %arg2: i32) -> (i32, i32, i32) {
    %c0_i32 = arith.constant 0 : i32
    %c0_i32_0 = arith.constant 0 : i32
    return %arg0, %arg1, %c0_i32 : i32, i32, i32
  }
}

module attributes {stable_mosaic.version = 11 : i64} {
  func.func @classifier_kernel(%arg0: i32, %arg1: memref<2x32xbf16, #tpu.memory_space<vmem>>, %arg2: memref<2x32xf32, #tpu.memory_space<vmem>>, %arg3: memref<32x6xbf16, #tpu.memory_space<vmem>>, %arg4: memref<32x6xbf16, #tpu.memory_space<vmem>>, %arg5: memref<1x6xf32, #tpu.memory_space<vmem>>, %arg6: memref<2x6xf32, #tpu.memory_space<vmem>>) attributes {dimension_semantics = [#tpu.dimension_semantics<arbitrary>], iteration_bounds = array<i64: 1>, scalar_prefetch = 0 : i64, scratch_operands = 0 : i64, tpu.core_type = #tpu.core_type<tc>, window_params = [{pipeline_mode = #tpu.pipeline_mode<synchronous>, transform_indices = @transform_0, window_bounds = array<i64: 2, 32>}, {pipeline_mode = #tpu.pipeline_mode<synchronous>, transform_indices = @transform_1, window_bounds = array<i64: 2, 32>}, {pipeline_mode = #tpu.pipeline_mode<synchronous>, transform_indices = @transform_2, window_bounds = array<i64: 32, 6>}, {pipeline_mode = #tpu.pipeline_mode<synchronous>, transform_indices = @transform_3, window_bounds = array<i64: 32, 6>}, {pipeline_mode = #tpu.pipeline_mode<synchronous>, transform_indices = @transform_4, window_bounds = array<i64: 1, 6>}, {pipeline_mode = #tpu.pipeline_mode<synchronous>, transform_indices = @transform_5, window_bounds = array<i64: 2, 6>}]} {
    %c0 = arith.constant 0 : index
    %c0_0 = arith.constant 0 : index
    %0 = vector.load %arg1[%c0, %c0_0] : memref<2x32xbf16, #tpu.memory_space<vmem>>, vector<2x32xbf16>
    %c0_1 = arith.constant 0 : index
    %c0_2 = arith.constant 0 : index
    %1 = vector.load %arg3[%c0_1, %c0_2] : memref<32x6xbf16, #tpu.memory_space<vmem>>, vector<32x6xbf16>
    %cst = arith.constant dense<0.000000e+00> : vector<2x6xf32>
    %2 = tpu.matmul %0, %1, %cst {dimension_numbers = #tpu.dot_dimension_numbers<[1], [0], [0], [1], [0, 0, 1, 1], [], []>} : vector<2x32xbf16>, vector<32x6xbf16>, vector<2x6xf32> -> vector<2x6xf32>
    %c0_3 = arith.constant 0 : index
    %c0_4 = arith.constant 0 : index
    %3 = vector.load %arg2[%c0_3, %c0_4] : memref<2x32xf32, #tpu.memory_space<vmem>>, vector<2x32xf32>
    %4 = arith.truncf %3 : vector<2x32xf32> to vector<2x32xbf16>
    %c0_5 = arith.constant 0 : index
    %c0_6 = arith.constant 0 : index
    %5 = vector.load %arg4[%c0_5, %c0_6] : memref<32x6xbf16, #tpu.memory_space<vmem>>, vector<32x6xbf16>
    %cst_7 = arith.constant dense<0.000000e+00> : vector<2x6xf32>
    %6 = tpu.matmul %4, %5, %cst_7 {dimension_numbers = #tpu.dot_dimension_numbers<[1], [0], [0], [1], [0, 0, 1, 1], [], []>} : vector<2x32xbf16>, vector<32x6xbf16>, vector<2x6xf32> -> vector<2x6xf32>
    %7 = arith.addf %2, %6 : vector<2x6xf32>
    %c0_8 = arith.constant 0 : index
    %c0_9 = arith.constant 0 : index
    %8 = vector.load %arg5[%c0_8, %c0_9] : memref<1x6xf32, #tpu.memory_space<vmem>>, vector<1x6xf32>
    %9 = vector.broadcast %8 : vector<1x6xf32> to vector<2x6xf32>
    %10 = arith.addf %7, %9 : vector<2x6xf32>
    %c0_10 = arith.constant 0 : index
    %c0_11 = arith.constant 0 : index
    %11 = vector.load %arg6[%c0_10, %c0_11] : memref<2x6xf32, #tpu.memory_space<vmem>>, vector<2x6xf32>
    tpu.vector_store %arg6[%c0_10, %c0_11], %10 {strides = array<i32>} : memref<2x6xf32, #tpu.memory_space<vmem>>, vector<2x6xf32>,
    return
  }
  func.func @transform_0(%arg0: i32) -> (i32, i32) {
    %c0_i32 = arith.constant 0 : i32
    %c0_i32_0 = arith.constant 0 : i32
    %c0_i32_1 = arith.constant 0 : i32
    return %c0_i32, %c0_i32_0 : i32, i32
  }
  func.func @transform_1(%arg0: i32) -> (i32, i32) {
    %c0_i32 = arith.constant 0 : i32
    %c0_i32_0 = arith.constant 0 : i32
    %c0_i32_1 = arith.constant 0 : i32
    return %c0_i32, %c0_i32_0 : i32, i32
  }
  func.func @transform_2(%arg0: i32) -> (i32, i32) {
    %c0_i32 = arith.constant 0 : i32
    %c0_i32_0 = arith.constant 0 : i32
    %c0_i32_1 = arith.constant 0 : i32
    return %c0_i32, %c0_i32_0 : i32, i32
  }
  func.func @transform_3(%arg0: i32) -> (i32, i32) {
    %c0_i32 = arith.constant 0 : i32
    %c0_i32_0 = arith.constant 0 : i32
    %c0_i32_1 = arith.constant 0 : i32
    return %c0_i32, %c0_i32_0 : i32, i32
  }
  func.func @transform_4(%arg0: i32) -> (i32, i32) {
    %c0_i32 = arith.constant 0 : i32
    %c0_i32_0 = arith.constant 0 : i32
    %c0_i32_1 = arith.constant 0 : i32
    return %c0_i32, %c0_i32_0 : i32, i32
  }
  func.func @transform_5(%arg0: i32) -> (i32, i32) {
    %c0_i32 = arith.constant 0 : i32
    %c0_i32_0 = arith.constant 0 : i32
    %c0_i32_1 = arith.constant 0 : i32
    return %c0_i32, %c0_i32_0 : i32, i32
  }
}

</mosaic_0001>

<llo_original>
// kernel: protbert_organism_classifier_forward.8
$region0: #{protbert_organism_classifier_forward.8}
  #allocation0 [shape = 'u32[]', space=smem, size = 0x4, offset = 0x4, fixed_abs, tag = 'smem constant byte address 0x4 - core index']
  #allocation1 [shape = 'u32[72,128]{1,0:T(1,128)}', space=vmem, size = 0x9000, scoped, tag = 'internal scratch']
  %s0 = inlined_call_operand.vmem [shape: bf16[2,8,32], index: 0, kind: input, shape index: {}]
  %s1 = inlined_call_operand.vmem [shape: bf16[32,256], index: 1, kind: input, shape index: {}]
  %s2 = inlined_call_operand.vmem [shape: f32[1,256], index: 2, kind: input, shape index: {}]
  %s3 = inlined_call_operand.vmem [shape: bf16[256,32], index: 3, kind: input, shape index: {}]
  %s4 = inlined_call_operand.vmem [shape: f32[1,32], index: 4, kind: input, shape index: {}]
  %s5 = inlined_call_operand.vmem [shape: f32[1,32], index: 5, kind: input, shape index: {}]
  %s6 = inlined_call_operand.vmem [shape: f32[1,32], index: 6, kind: input, shape index: {}]
  %s7 = inlined_call_operand.vmem [shape: bf16[2,8,32], index: 7, kind: output, shape index: {}]
  %s8 = sld [smem:[#allocation0]]
  $region61: #{protbert_organism_classifier_forward.8} parent=0
    _
  %s10 = ssub.s32 1, %s8
  %s11 = scalar_select 0, %s10, %s8
  loop: start=0, step=1, limit=4
  $region2: #{protbert_organism_classifier_forward.8} parent=0 // loop_pre_header
    _
  $region3: #{protbert_organism_classifier_forward.8} parent=0 // loop_header
    %s13 = sphi 0, %s17
    %p14 = scmp.ge.s32.totalorder %s13, 4
    %s20 = sphi 0, %s32
    %s21 = sphi 0, %s28
    %s22 = sphi 0, %s20
    %s23 = sphi 0, %s21
    %s24 = sphi 0, %s22
    %s25 = sphi 0, %s23
    %s37 = sphi 0, %s39
    %s40 = sphi 0, %s37
    %s41 = sphi 0, %s40
    %s57 = sphi 0, %s41
    %s61 = sphi 0, %s61
    %s63 = sphi 0, %s61
    %s64 = sphi 0, %s63
    %s78 = sphi 0, %s64
    %s82 = sphi 0, %s82
    %s84 = sphi 0, %s82
    %s85 = sphi 0, %s84
    %s99 = sphi 0, %s85
    %s103 = sphi 0, %s103
    %s105 = sphi 0, %s103
    %s106 = sphi 0, %s105
    %s120 = sphi 0, %s106
    %s124 = sphi 0, %s124
    %s126 = sphi 0, %s124
    %s127 = sphi 0, %s126
    %s141 = sphi 0, %s127
    %s145 = sphi 0, %s145
    %s147 = sphi 0, %s145
    %s148 = sphi 0, %s147
    %s162 = sphi 0, %s148
    %s166 = sphi 0, %s166
    %s168 = sphi 0, %s166
    %s169 = sphi 0, %s168
    %s183 = sphi 0, %s169
    %s191 = sphi 0, %s193
    %s194 = sphi 0, %s191
    %s195 = sphi 0, %s194
    %s211 = sphi 0, %s195
  $region4: #{protbert_organism_classifier_forward.8} parent=0 // loop_header_branch
    %16 = sbr.rel (%p14) target = $region8
  $region5: #{protbert_organism_classifier_forward.8} parent=0 // loop_body
    %s18 = ssub.s32 %s13, 1
    %s19 = ssub.s32 %s13, 2
    %s26 = sadd.s32 1, %s21
    %p27 = scmp.ge.s32.totalorder %s26, 1
    %s28 = scalar_select %p27, 0, %s26
    %s29 = sadd.s32 1, %s20
    %s30 = scalar_select %p27, %s29, %s20
    %p31 = scmp.ge.s32.totalorder %s30, 2
    %s32 = scalar_select %p31, 0, %s30
    %s33 = ssub.s32 %s20, %s32
    %s34 = ssub.s32 %s21, %s28
    %s35 = sor.u32 %s33, %s34
    %p36 = scmp.eq.s32.totalorder %s35, 0
    %s38 = sadd.s32 %s37, 1
    %s39 = scalar_select %p36, %s37, %s38
    %p42 = pneg %p36
    %p43 = scmp.eq.s32.totalorder %s13, 1
    %p44 = por %p42, %p43
    %p45 = scmp.ne.s32.totalorder %s37, %s40
    %p46 = scmp.eq.s32.totalorder %s13, 0
    %p47 = por %p45, %p46
    %p48 = scmp.ne.s32.totalorder %s37, %s40
    %p49 = scmp.eq.s32.totalorder %s18, 1
    %p50 = por %p48, %p49
    %p51 = scmp.ne.s32.totalorder %s40, %s41
    %p52 = scmp.eq.s32.totalorder %s18, 0
    %p53 = por %p51, %p52
    %p54 = scmp.ne.s32.totalorder %s40, %s41
    %p55 = scmp.eq.s32.totalorder %s19, 1
    %p56 = por %p54, %p55
    %p58 = scmp.ne.s32.totalorder %s41, %s57
    %p59 = scmp.eq.s32.totalorder %s19, 0
    %p60 = por %p58, %p59
    %s62 = sadd.s32 %s61, 1
    %p65 = scmp.eq.s32.totalorder %s13, 1
    %p66 = scmp.ne.s32.totalorder %s61, %s63
    %p67 = scmp.eq.s32.totalorder %s13, 0
    %p68 = por %p66, %p67
    %p69 = scmp.ne.s32.totalorder %s61, %s63
    %p70 = scmp.eq.s32.totalorder %s18, 1
    %p71 = por %p69, %p70
    %p72 = scmp.ne.s32.totalorder %s63, %s64
    %p73 = scmp.eq.s32.totalorder %s18, 0
    %p74 = por %p72, %p73
    %p75 = scmp.ne.s32.totalorder %s63, %s64
    %p76 = scmp.eq.s32.totalorder %s19, 1
    %p77 = por %p75, %p76
    %p79 = scmp.ne.s32.totalorder %s64, %s78
    %p80 = scmp.eq.s32.totalorder %s19, 0
    %p81 = por %p79, %p80
    %s83 = sadd.s32 %s82, 1
    %p86 = scmp.eq.s32.totalorder %s13, 1
    %p87 = scmp.ne.s32.totalorder %s82, %s84
    %p88 = scmp.eq.s32.totalorder %s13, 0
    %p89 = por %p87, %p88
    %p90 = scmp.ne.s32.totalorder %s82, %s84
    %p91 = scmp.eq.s32.totalorder %s18, 1
    %p92 = por %p90, %p91
    %p93 = scmp.ne.s32.totalorder %s84, %s85
    %p94 = scmp.eq.s32.totalorder %s18, 0
    %p95 = por %p93, %p94
    %p96 = scmp.ne.s32.totalorder %s84, %s85
    %p97 = scmp.eq.s32.totalorder %s19, 1
    %p98 = por %p96, %p97
    %p100 = scmp.ne.s32.totalorder %s85, %s99
    %p101 = scmp.eq.s32.totalorder %s19, 0
    %p102 = por %p100, %p101
    %s104 = sadd.s32 %s103, 1
    %p107 = scmp.eq.s32.totalorder %s13, 1
    %p108 = scmp.ne.s32.totalorder %s103, %s105
    %p109 = scmp.eq.s32.totalorder %s13, 0
    %p110 = por %p108, %p109
    %p111 = scmp.ne.s32.totalorder %s103, %s105
    %p112 = scmp.eq.s32.totalorder %s18, 1
    %p113 = por %p111, %p112
    %p114 = scmp.ne.s32.totalorder %s105, %s106
    %p115 = scmp.eq.s32.totalorder %s18, 0
    %p116 = por %p114, %p115
    %p117 = scmp.ne.s32.totalorder %s105, %s106
    %p118 = scmp.eq.s32.totalorder %s19, 1
    %p119 = por %p117, %p118
    %p121 = scmp.ne.s32.totalorder %s106, %s120
    %p122 = scmp.eq.s32.totalorder %s19, 0
    %p123 = por %p121, %p122
    %s125 = sadd.s32 %s124, 1
    %p128 = scmp.eq.s32.totalorder %s13, 1
    %p129 = scmp.ne.s32.totalorder %s124, %s126
    %p130 = scmp.eq.s32.totalorder %s13, 0
    %p131 = por %p129, %p130
    %p132 = scmp.ne.s32.totalorder %s124, %s126
    %p133 = scmp.eq.s32.totalorder %s18, 1
    %p134 = por %p132, %p133
    %p135 = scmp.ne.s32.totalorder %s126, %s127
    %p136 = scmp.eq.s32.totalorder %s18, 0
    %p137 = por %p135, %p136
    %p138 = scmp.ne.s32.totalorder %s126, %s127
    %p139 = scmp.eq.s32.totalorder %s19, 1
    %p140 = por %p138, %p139
    %p142 = scmp.ne.s32.totalorder %s127, %s141
    %p143 = scmp.eq.s32.totalorder %s19, 0
    %p144 = por %p142, %p143
    %s146 = sadd.s32 %s145, 1
    %p149 = scmp.eq.s32.totalorder %s13, 1
    %p150 = scmp.ne.s32.totalorder %s145, %s147
    %p151 = scmp.eq.s32.totalorder %s13, 0
    %p152 = por %p150, %p151
    %p153 = scmp.ne.s32.totalorder %s145, %s147
    %p154 = scmp.eq.s32.totalorder %s18, 1
    %p155 = por %p153, %p154
    %p156 = scmp.ne.s32.totalorder %s147, %s148
    %p157 = scmp.eq.s32.totalorder %s18, 0
    %p158 = por %p156, %p157
    %p159 = scmp.ne.s32.totalorder %s147, %s148
    %p160 = scmp.eq.s32.totalorder %s19, 1
    %p161 = por %p159, %p160
    %p163 = scmp.ne.s32.totalorder %s148, %s162
    %p164 = scmp.eq.s32.totalorder %s19, 0
    %p165 = por %p163, %p164
    %s167 = sadd.s32 %s166, 1
    %p170 = scmp.eq.s32.totalorder %s13, 1
    %p171 = scmp.ne.s32.totalorder %s166, %s168
    %p172 = scmp.eq.s32.totalorder %s13, 0
    %p173 = por %p171, %p172
    %p174 = scmp.ne.s32.totalorder %s166, %s168
    %p175 = scmp.eq.s32.totalorder %s18, 1
    %p176 = por %p174, %p175
    %p177 = scmp.ne.s32.totalorder %s168, %s169
    %p178 = scmp.eq.s32.totalorder %s18, 0
    %p179 = por %p177, %p178
    %p180 = scmp.ne.s32.totalorder %s168, %s169
    %p181 = scmp.eq.s32.totalorder %s19, 1
    %p182 = por %p180, %p181
    %p184 = scmp.ne.s32.totalorder %s169, %s183
    %p185 = scmp.eq.s32.totalorder %s19, 0
    %p186 = por %p184, %p185
    %s187 = ssub.s32 %s20, %s32
    %s188 = ssub.s32 %s21, %s28
    %s189 = sor.u32 %s187, %s188
    %p190 = scmp.eq.s32.totalorder %s189, 0
    %s192 = sadd.s32 %s191, 1
    %s193 = scalar_select %p190, %s191, %s192
    %p196 = pneg %p190
    %p197 = scmp.eq.s32.totalorder %s13, 1
    %p198 = por %p196, %p197
    %p199 = scmp.ne.s32.totalorder %s191, %s194
    %p200 = scmp.eq.s32.totalorder %s13, 0
    %p201 = por %p199, %p200
    %p202 = scmp.ne.s32.totalorder %s191, %s194
    %p203 = scmp.eq.s32.totalorder %s18, 1
    %p204 = por %p202, %p203
    %p205 = scmp.ne.s32.totalorder %s194, %s195
    %p206 = scmp.eq.s32.totalorder %s18, 0
    %p207 = por %p205, %p206
    %p208 = scmp.ne.s32.totalorder %s194, %s195
    %p209 = scmp.eq.s32.totalorder %s19, 1
    %p210 = por %p208, %p209
    %p212 = scmp.ne.s32.totalorder %s195, %s211
    %p213 = scmp.eq.s32.totalorder %s19, 0
    %p214 = por %p212, %p213
    %p215 = scmp.le.s32.totalorder 1, %s13
    %p216 = scmp.lt.s32.totalorder %s13, 3
    %p217 = pnand %p215, %p216
    %p218 = pneg %p217
    // Predicated region
    $region9: #{protbert_organism_classifier_forward.8} parent=5 // pred_check
      _
    $region10: #{protbert_organism_classifier_forward.8} parent=5 // pred_check_branch
      %220 = sbr.rel (%p217) target = $region12
    $region11: #{protbert_organism_classifier_forward.8} parent=5 // pred_region
      %s221 = ssub.s32 %s13, 1
      // Predicated region
      $region13: #{protbert_organism_classifier_forward.8} parent=11 // pred_check
        %p222 = pneg %p74
      $region14: #{protbert_organism_classifier_forward.8} parent=11 // pred_check_branch
        %224 = sbr.rel (%p222) target = $region16
      $region15: #{protbert_organism_classifier_forward.8} parent=11 // pred_region
        _
      $region16: #{protbert_organism_classifier_forward.8} parent=11 // pred_fallthru
        _
      // Predicated region
      $region17: #{protbert_organism_classifier_forward.8} parent=11 // pred_check
        %p225 = pneg %p95
      $region18: #{protbert_organism_classifier_forward.8} parent=11 // pred_check_branch
        %227 = sbr.rel (%p225) target = $region20
      $region19: #{protbert_organism_classifier_forward.8} parent=11 // pred_region
        _
      $region20: #{protbert_organism_classifier_forward.8} parent=11 // pred_fallthru
        _
      // Predicated region
      $region21: #{protbert_organism_classifier_forward.8} parent=11 // pred_check
        %p228 = pneg %p116
      $region22: #{protbert_organism_classifier_forward.8} parent=11 // pred_check_branch
        %230 = sbr.rel (%p228) target = $region24
      $region23: #{protbert_organism_classifier_forward.8} parent=11 // pred_region
        _
      $region24: #{protbert_organism_classifier_forward.8} parent=11 // pred_fallthru
        _
      // Predicated region
      $region25: #{protbert_organism_classifier_forward.8} parent=11 // pred_check
        %p231 = pneg %p137
      $region26: #{protbert_organism_classifier_forward.8} parent=11 // pred_check_branch
        %233 = sbr.rel (%p231) target = $region28
      $region27: #{protbert_organism_classifier_forward.8} parent=11 // pred_region
        _
      $region28: #{protbert_organism_classifier_forward.8} parent=11 // pred_fallthru
        _
      // Predicated region
      $region29: #{protbert_organism_classifier_forward.8} parent=11 // pred_check
        %p234 = pneg %p158
      $region30: #{protbert_organism_classifier_forward.8} parent=11 // pred_check_branch
        %236 = sbr.rel (%p234) target = $region32
      $region31: #{protbert_organism_classifier_forward.8} parent=11 // pred_region
        _
      $region32: #{protbert_organism_classifier_forward.8} parent=11 // pred_fallthru
        _
      // Predicated region
      $region33: #{protbert_organism_classifier_forward.8} parent=11 // pred_check
        %p237 = pneg %p179
      $region34: #{protbert_organism_classifier_forward.8} parent=11 // pred_check_branch
        %239 = sbr.rel (%p237) target = $region36
      $region35: #{protbert_organism_classifier_forward.8} parent=11 // pred_region
        _
      $region36: #{protbert_organism_classifier_forward.8} parent=11 // pred_fallthru
        _
    $region12: #{protbert_organism_classifier_forward.8} parent=5 // pred_fallthru
      _
    %p240 = scmp.lt.s32.totalorder %s13, 2
    // Predicated region
    $region37: #{protbert_organism_classifier_forward.8} parent=5 // pred_check
      %p241 = pneg %p240
    $region38: #{protbert_organism_classifier_forward.8} parent=5 // pred_check_branch
      %243 = sbr.rel (%p241) target = $region40
    $region39: #{protbert_organism_classifier_forward.8} parent=5 // pred_region
      // Predicated region
      $region41: #{protbert_organism_classifier_forward.8} parent=39 // pred_check
        %p244 = pneg %p47
      $region42: #{protbert_organism_classifier_forward.8} parent=39 // pred_check_branch
        %246 = sbr.rel (%p244) target = $region44
      $region43: #{protbert_organism_classifier_forward.8} parent=39 // pred_region
        %p247 = scmp.lt.s32.totalorder %s20, 1
        %s248 = scalar_select %p247, %s20, 1
        %p249 = scmp.lt.s32.totalorder %s21, 0
        %s250 = scalar_select %p249, %s21, 0
        %s251 = sadd.s32 %s250, %s248
        %s252 = smul.addr %s251, 4
        %s253 = scalar_lea.vmem %s0, %s252
      $region44: #{protbert_organism_classifier_forward.8} parent=39 // pred_fallthru
        _
    $region40: #{protbert_organism_classifier_forward.8} parent=5 // pred_fallthru
      _
    %p254 = scmp.le.s32.totalorder 1, %s13
    %p255 = scmp.lt.s32.totalorder %s13, 3
    %p256 = pnand %p254, %p255
    %p257 = pneg %p256
    // Predicated region
    $region45: #{protbert_organism_classifier_forward.8} parent=5 // pred_check
      _
    $region46: #{protbert_organism_classifier_forward.8} parent=5 // pred_check_branch
      %259 = sbr.rel (%p256) target = $region48
    $region47: #{protbert_organism_classifier_forward.8} parent=5 // pred_region
      %s260 = ssub.s32 %s13, 1
      %p261 = scmp.lt.s32.totalorder %s22, 1
      %s262 = scalar_select %p261, %s22, 1
      %p263 = scmp.lt.s32.totalorder %s23, 0
      %s264 = scalar_select %p263, %s23, 0
      %s265 = sadd.s32 %s264, %s262
      %s266 = smul.addr %s265, 4
      %s267 = scalar_lea.vmem %s0, %s266
      %p268 = pneg %p53
      %p269 = pneg %p50
      %p270 = pneg %p74
      %p271 = pneg %p71
      %p272 = pneg %p95
      %p273 = pneg %p92
      %p274 = pneg %p116
      %p275 = pneg %p113
      %p276 = pneg %p137
      %p277 = pneg %p134
      %p278 = pneg %p158
      %p279 = pneg %p155
      %p280 = pneg %p179
      %p281 = pneg %p176
      %p282 = pneg %p207
      %p283 = pneg %p204
      %p284 = scmp.lt.s32.totalorder %s22, 1
      %s285 = scalar_select %p284, %s22, 1
      %p286 = scmp.lt.s32.totalorder %s23, 0
      %s287 = scalar_select %p286, %s23, 0
      %s288 = sadd.s32 %s287, %s285
      %s289 = smul.addr %s288, 4
      %s290 = scalar_lea.vmem %s7, %s289
      %p291 = scmp.lt.s32.totalorder %s22, 1
      %s292 = scalar_select %p291, %s22, 1
      %p293 = scmp.lt.s32.totalorder %s23, 0
      %s294 = scalar_select %p293, %s23, 0
      %s295 = sadd.s32 %s294, %s292
      %s296 = smul.addr %s295, 4
      %s297 = scalar_lea.vmem %s0, %s296
      %p298 = scmp.lt.s32.totalorder %s22, 1
      %s299 = scalar_select %p298, %s22, 1
      %p300 = scmp.lt.s32.totalorder %s23, 0
      %s301 = scalar_select %p300, %s23, 0
      %s302 = sadd.s32 %s301, %s299
      %s303 = smul.addr %s302, 4
      %s304 = scalar_lea.vmem %s7, %s303
      %v306 = vld [vmem:[%s297] sm:$0xf]
      %v307 = vld [vmem:[%s1] sm:$0xff]
      %v308 = vld [vmem:[%s1 + $0x8] sm:$0xff]
      %v309 = vld [vmem:[%s1 + $0x10] sm:$0xff]
      %v310 = vld [vmem:[%s1 + $0x18] sm:$0xff]
      %v311 = vld [vmem:[%s2] sm:$0x3]
      %v313 = vperm.slane %v311, 0
      %v314 = vperm.slane %v311, 1
      %v321 = vunpack.c.l.b16 %v307
      %v322 = vunpack.c.h.b16 %v307
      %v323 = vunpack.c.l.b16 %v308
      %v324 = vunpack.c.h.b16 %v308
      %v325 = vunpack.c.l.b16 %v309
      %v326 = vunpack.c.h.b16 %v309
      %v327 = vunpack.c.l.b16 %v310
      %v328 = vunpack.c.h.b16 %v310
      %v329 = vpack.c.b16 %v323, %v321
      %v330 = vpack.c.b16 %v324, %v322
      %v331 = vpack.c.b16 %v327, %v325
      %v332 = vpack.c.b16 %v328, %v326
      %vm337 = vcmask 261120
      %v339 = vsel %vm337, %v306, 0
      %341 = vmatpush.bf16.msra.mxu0 0
      %342 = vmatpush.bf16.msra.mxu0 0
      %343 = vmatpush.bf16.msra.mxu0 0
      %344 = vmatpush.bf16.msra.mxu0 0
      %345 = vmatpush.bf16.msra.mxu0 0
      %346 = vmatpush.bf16.msra.mxu0 0
      %347 = vmatpush.bf16.msra.mxu0 %v331
      %348 = vmatpush.bf16.msra.mxu0 %v329
      %349 = vmatmul.bf16.gmra.mxu0 %v339
      %v350 = vpop.f32.mrf.mxu0
      %v351 = vadd.f32 %v313, %v350
      %v352 = vpop.f32.mrf.mxu0
      %353 = vdwg.mxu0
      %354 = vmatpush.bf16.msra.mxu0 0
      %355 = vmatpush.bf16.msra.mxu0 0
      %356 = vmatpush.bf16.msra.mxu0 0
      %357 = vmatpush.bf16.msra.mxu0 0
      %358 = vmatpush.bf16.msra.mxu0 0
      %359 = vmatpush.bf16.msra.mxu0 0
      %360 = vmatpush.bf16.msra.mxu0 %v332
      %361 = vmatpush.bf16.msra.mxu0 %v330
      %362 = vmatmul.bf16.gmra.mxu0 %v339
      %v363 = vpop.f32.mrf.mxu0
      %v364 = vadd.f32 %v314, %v363
      %v365 = vpop.f32.mrf.mxu0
      %366 = vdwg.mxu0
      %v367 = vmul.f32 %v351, 0.5
      %v368 = vmul.f32 %v364, 0.5
      %v369 = vmul.f32 %v351, 0.044715
      %v370 = vmul.f32 %v364, 0.044715
      %v371 = vmul.f32 %v369, %v351
      %v372 = vmul.f32 %v370, %v364
      %v373 = vmul.f32 %v371, %v351
      %v374 = vmul.f32 %v372, %v364
      %v375 = vadd.f32 %v351, %v373
      %v376 = vadd.f32 %v364, %v374
      %v377 = vmul.f32 %v375, 0.7978846
      %v378 = vmul.f32 %v376, 0.7978846
      %v379 = vtanh.pop %v377
      %v380 = vtanh.pop %v378
      %v381 = vadd.f32 %v379, 1.0
      %v382 = vadd.f32 %v380, 1.0
      %v383 = vmul.f32 %v367, %v381
      %v384 = vmul.f32 %v368, %v382
      %v385 = vpack.c.bf16 %v383, %v383
      %v386 = vpack.c.bf16 %v384, %v384
      %v387 = vld [vmem:[%s3] sm:$0xf]
      %v388 = vld [vmem:[%s3 + $0x4] sm:$0xf]
      %v389 = vld [vmem:[%s3 + $0x8] sm:$0xf]
      %v390 = vld [vmem:[%s3 + $0xc] sm:$0xf]
      %v391 = vld [vmem:[%s3 + $0x10] sm:$0xf]
      %v392 = vld [vmem:[%s3 + $0x14] sm:$0xf]
      %v393 = vld [vmem:[%s3 + $0x18] sm:$0xf]
      %v394 = vld [vmem:[%s3 + $0x1c] sm:$0xf]
      %v395 = vld [vmem:[%s3 + $0x20] sm:$0xf]
      %v396 = vld [vmem:[%s3 + $0x24] sm:$0xf]
      %v397 = vld [vmem:[%s3 + $0x28] sm:$0xf]
      %v398 = vld [vmem:[%s3 + $0x2c] sm:$0xf]
      %v399 = vld [vmem:[%s3 + $0x30] sm:$0xf]
      %v400 = vld [vmem:[%s3 + $0x34] sm:$0xf]
      %v401 = vld [vmem:[%s3 + $0x38] sm:$0xf]
      %v402 = vld [vmem:[%s3 + $0x3c] sm:$0xf]
      %v403 = vld [vmem:[%s3 + $0x40] sm:$0xf]
      %v404 = vld [vmem:[%s3 + $0x44] sm:$0xf]
      %v405 = vld [vmem:[%s3 + $0x48] sm:$0xf]
      %v406 = vld [vmem:[%s3 + $0x4c] sm:$0xf]
      %v407 = vld [vmem:[%s3 + $0x50] sm:$0xf]
      %v408 = vld [vmem:[%s3 + $0x54] sm:$0xf]
      %v409 = vld [vmem:[%s3 + $0x58] sm:$0xf]
      %v410 = vld [vmem:[%s3 + $0x5c] sm:$0xf]
      %v411 = vld [vmem:[%s3 + $0x60] sm:$0xf]
      %v412 = vld [vmem:[%s3 + $0x64] sm:$0xf]
      %v413 = vld [vmem:[%s3 + $0x68] sm:$0xf]
      %v414 = vld [vmem:[%s3 + $0x6c] sm:$0xf]
      %v415 = vld [vmem:[%s3 + $0x70] sm:$0xf]
      %v416 = vld [vmem:[%s3 + $0x74] sm:$0xf]
      %v417 = vld [vmem:[%s3 + $0x78] sm:$0xf]
      %v418 = vld [vmem:[%s3 + $0x7c] sm:$0xf]
      %v451 = vunpack.c.l.b16 %v387
      %v452 = vunpack.c.l.b16 %v388
      %v453 = vunpack.c.l.b16 %v389
      %v454 = vunpack.c.l.b16 %v390
      %v455 = vunpack.c.l.b16 %v391
      %v456 = vunpack.c.l.b16 %v392
      %v457 = vunpack.c.l.b16 %v393
      %v458 = vunpack.c.l.b16 %v394
      %v459 = vunpack.c.l.b16 %v395
      %v460 = vunpack.c.l.b16 %v396
      %v461 = vunpack.c.l.b16 %v397
      %v462 = vunpack.c.l.b16 %v398
      %v463 = vunpack.c.l.b16 %v399
      %v464 = vunpack.c.l.b16 %v400
      %v465 = vunpack.c.l.b16 %v401
      %v466 = vunpack.c.l.b16 %v402
      %v467 = vunpack.c.l.b16 %v403
      %v468 = vunpack.c.l.b16 %v404
      %v469 = vunpack.c.l.b16 %v405
      %v470 = vunpack.c.l.b16 %v406
      %v471 = vunpack.c.l.b16 %v407
      %v472 = vunpack.c.l.b16 %v408
      %v473 = vunpack.c.l.b16 %v409
      %v474 = vunpack.c.l.b16 %v410
      %v475 = vunpack.c.l.b16 %v411
      %v476 = vunpack.c.l.b16 %v412
      %v477 = vunpack.c.l.b16 %v413
      %v478 = vunpack.c.l.b16 %v414
      %v479 = vunpack.c.l.b16 %v415
      %v480 = vunpack.c.l.b16 %v416
      %v481 = vunpack.c.l.b16 %v417
      %v482 = vunpack.c.l.b16 %v418
      %v483 = vpack.c.b16 %v452, %v451
      %v484 = vpack.c.b16 %v454, %v453
      %v485 = vpack.c.b16 %v456, %v455
      %v486 = vpack.c.b16 %v458, %v457
      %v487 = vpack.c.b16 %v460, %v459
      %v488 = vpack.c.b16 %v462, %v461
      %v489 = vpack.c.b16 %v464, %v463
      %v490 = vpack.c.b16 %v466, %v465
      %v491 = vpack.c.b16 %v468, %v467
      %v492 = vpack.c.b16 %v470, %v469
      %v493 = vpack.c.b16 %v472, %v471
      %v494 = vpack.c.b16 %v474, %v473
      %v495 = vpack.c.b16 %v476, %v475
      %v496 = vpack.c.b16 %v478, %v477
      %v497 = vpack.c.b16 %v480, %v479
      %v498 = vpack.c.b16 %v482, %v481
      %515 = vmatpush.bf16.msra.mxu0 %v490
      %516 = vmatpush.bf16.msra.mxu0 %v489
      %517 = vmatpush.bf16.msra.mxu0 %v488
      %518 = vmatpush.bf16.msra.mxu0 %v487
      %519 = vmatpush.bf16.msra.mxu0 %v486
      %520 = vmatpush.bf16.msra.mxu0 %v485
      %521 = vmatpush.bf16.msra.mxu0 %v484
      %522 = vmatpush.bf16.msra.mxu0 %v483
      %523 = vmatmul.bf16.gmra.mxu0 %v385
      %v524 = vpop.f32.mrf.mxu0
      %v525 = vadd.f32 0.0, %v524
      %v526 = vpop.f32.mrf.mxu0
      %527 = vdwg.mxu0
      %528 = vmatpush.bf16.msra.mxu0 %v498
      %529 = vmatpush.bf16.msra.mxu0 %v497
      %530 = vmatpush.bf16.msra.mxu0 %v496
      %531 = vmatpush.bf16.msra.mxu0 %v495
      %532 = vmatpush.bf16.msra.mxu0 %v494
      %533 = vmatpush.bf16.msra.mxu0 %v493
      %534 = vmatpush.bf16.msra.mxu0 %v492
      %535 = vmatpush.bf16.msra.mxu0 %v491
      %536 = vmatmul.bf16.gmra.mxu0 %v386
      %v537 = vpop.f32.mrf.mxu0
      %v538 = vadd.f32 %v525, %v537
      %v539 = vpop.f32.mrf.mxu0
      %540 = vdwg.mxu0
      %v541 = vunpack.c.l.bf16 %v306
      %v542 = vadd.f32 %v541, %v538
      %v543 = vld [vmem:[%s4] sm:$0x1]
      %v545 = vperm.slane %v543, 0
      %v547 = vadd.f32 %v542, %v545
      %v548 = vld [vmem:[%s5] sm:$0x1]
      %v549 = vld [vmem:[%s6] sm:$0x1]
      %v550 = vsel %vm337, %v547, 0.0
      %551 = vadd.xlane.f32.xlu0 %v550
      %v552 = vpop.xlane.xlu0 %551
      %v553 = vmul.f32 %v547, %v547
      %v554 = vsel %vm337, %v553, 0.0
      %555 = vadd.xlane.f32.xlu0 %v554
      %v556 = vpop.xlane.xlu0 %555
      %v557 = vmul.f32 %v552, 0.03125
      %v558 = vmul.f32 %v556, 0.03125
      %v559 = vmul.f32 %v557, %v557
      %v560 = vsub.f32 %v558, %v559
      %v561 = vsub.f32 %v547, %v557
      %v562 = vadd.f32 %v560, 1e-12
      %v563 = vrsqrt.pop %v562
      %v564 = vmul.f32 %v563, %v562
      %v565 = vmul.f32 %v564, %v563
      %v566 = vmul.f32 0.5, %v565
      %v567 = vsub.f32 1.5, %v566
      %v568 = vmul.f32 %v563, %v567
      %vm569 = vweird.f32 %v562
      %vm570 = vweird.f32 %v563
      %vm571 = vmor %vm569, %vm570
      %v572 = vsel %vm571, %v563, %v568
      %v573 = vmul.f32 %v561, %v572
      %v575 = vperm.slane %v548, 0
      %v577 = vmul.f32 %v573, %v575
      %v579 = vperm.slane %v549, 0
      %v581 = vadd.f32 %v577, %v579
      %v582 = vpack.c.bf16 %v581, %v581
      %vm583 = vcmask 257024
      %584 = vst.msk [vmem:[%s304] sm:$0xf] %vm583, %v582
      %p585 = scmp.lt.s32.totalorder %s22, 1
      %s586 = scalar_select %p585, %s22, 1
      %p587 = scmp.lt.s32.totalorder %s23, 0
      %s588 = scalar_select %p587, %s23, 0
      %s589 = sadd.s32 %s588, %s586
      %s590 = smul.addr %s589, 4
      %s591 = scalar_lea.vmem %s7, %s590
      // Predicated region
      $region49: #{protbert_organism_classifier_forward.8} parent=47 // pred_check
        %p592 = pneg %p204
      $region50: #{protbert_organism_classifier_forward.8} parent=47 // pred_check_branch
        %594 = sbr.rel (%p592) target = $region52
      $region51: #{protbert_organism_classifier_forward.8} parent=47 // pred_region
        _
      $region52: #{protbert_organism_classifier_forward.8} parent=47 // pred_fallthru
        _
    $region48: #{protbert_organism_classifier_forward.8} parent=5 // pred_fallthru
      _
    %p595 = scmp.le.s32.totalorder 2, %s13
    // Predicated region
    $region53: #{protbert_organism_classifier_forward.8} parent=5 // pred_check
      %p596 = pneg %p595
    $region54: #{protbert_organism_classifier_forward.8} parent=5 // pred_check_branch
      %598 = sbr.rel (%p596) target = $region56
    $region55: #{protbert_organism_classifier_forward.8} parent=5 // pred_region
      %s599 = ssub.s32 %s13, 2
      // Predicated region
      $region57: #{protbert_organism_classifier_forward.8} parent=55 // pred_check
        %p600 = pneg %p210
      $region58: #{protbert_organism_classifier_forward.8} parent=55 // pred_check_branch
        %602 = sbr.rel (%p600) target = $region60
      $region59: #{protbert_organism_classifier_forward.8} parent=55 // pred_region
        %p603 = scmp.lt.s32.totalorder %s24, 1
        %s604 = scalar_select %p603, %s24, 1
        %p605 = scmp.lt.s32.totalorder %s25, 0
        %s606 = scalar_select %p605, %s25, 0
        %s607 = sadd.s32 %s606, %s604
        %s608 = smul.addr %s607, 4
        %s609 = scalar_lea.vmem %s7, %s608
      $region60: #{protbert_organism_classifier_forward.8} parent=55 // pred_fallthru
        _
    $region56: #{protbert_organism_classifier_forward.8} parent=5 // pred_fallthru
      _
  $region6: #{protbert_organism_classifier_forward.8} parent=0 // loop_footer
    %s17 = sadd.s32 1, %s13
  $region7: #{protbert_organism_classifier_forward.8} parent=0 // loop_footer_branch
    %12 = sbr.rel target = $region3
  $region8: #{protbert_organism_classifier_forward.8} parent=0 // loop_exit
    _

// kernel: protbert_organism_classifier_forward.6
$region0: #{protbert_organism_classifier_forward.6}
  #allocation0 [shape = 'u32[]', space=smem, size = 0x4, offset = 0x4, fixed_abs, tag = 'smem constant byte address 0x4 - core index']
  #allocation1 [shape = 'u32[72,128]{1,0:T(1,128)}', space=vmem, size = 0x9000, scoped, tag = 'internal scratch']
  %s0 = inlined_call_operand.vmem [shape: f32[2,8,32], index: 0, kind: input, shape index: {}]
  %s1 = inlined_call_operand.vmem [shape: f32[8,32], index: 1, kind: input, shape index: {}]
  %s2 = inlined_call_operand.vmem [shape: f32[1,32], index: 2, kind: input, shape index: {}]
  %s3 = inlined_call_operand.vmem [shape: f32[1,32], index: 3, kind: input, shape index: {}]
  %s4 = inlined_call_operand.vmem [shape: f32[1,32], index: 4, kind: input, shape index: {}]
  %s5 = inlined_call_operand.vmem [shape: bf16[2,8,32], index: 5, kind: output, shape index: {}]
  %s6 = sld [smem:[#allocation0]]
  $region53: #{protbert_organism_classifier_forward.6} parent=0
    _
  %s8 = ssub.s32 1, %s6
  %s9 = scalar_select 0, %s8, %s6
  loop: start=0, step=1, limit=4
  $region2: #{protbert_organism_classifier_forward.6} parent=0 // loop_pre_header
    _
  $region3: #{protbert_organism_classifier_forward.6} parent=0 // loop_header
    %s11 = sphi 0, %s15
    %p12 = scmp.ge.s32.totalorder %s11, 4
    %s18 = sphi 0, %s30
    %s19 = sphi 0, %s26
    %s20 = sphi 0, %s18
    %s21 = sphi 0, %s19
    %s22 = sphi 0, %s20
    %s23 = sphi 0, %s21
    %s35 = sphi 0, %s37
    %s38 = sphi 0, %s35
    %s39 = sphi 0, %s38
    %s55 = sphi 0, %s39
    %s61 = sphi 0, %s63
    %s64 = sphi 0, %s61
    %s65 = sphi 0, %s64
    %s81 = sphi 0, %s65
    %s85 = sphi 0, %s85
    %s87 = sphi 0, %s85
    %s88 = sphi 0, %s87
    %s102 = sphi 0, %s88
    %s106 = sphi 0, %s106
    %s108 = sphi 0, %s106
    %s109 = sphi 0, %s108
    %s123 = sphi 0, %s109
    %s127 = sphi 0, %s127
    %s129 = sphi 0, %s127
    %s130 = sphi 0, %s129
    %s144 = sphi 0, %s130
    %s152 = sphi 0, %s154
    %s155 = sphi 0, %s152
    %s156 = sphi 0, %s155
    %s172 = sphi 0, %s156
  $region4: #{protbert_organism_classifier_forward.6} parent=0 // loop_header_branch
    %14 = sbr.rel (%p12) target = $region8
  $region5: #{protbert_organism_classifier_forward.6} parent=0 // loop_body
    %s16 = ssub.s32 %s11, 1
    %s17 = ssub.s32 %s11, 2
    %s24 = sadd.s32 1, %s19
    %p25 = scmp.ge.s32.totalorder %s24, 1
    %s26 = scalar_select %p25, 0, %s24
    %s27 = sadd.s32 1, %s18
    %s28 = scalar_select %p25, %s27, %s18
    %p29 = scmp.ge.s32.totalorder %s28, 2
    %s30 = scalar_select %p29, 0, %s28
    %s31 = ssub.s32 %s18, %s30
    %s32 = ssub.s32 %s19, %s26
    %s33 = sor.u32 %s31, %s32
    %p34 = scmp.eq.s32.totalorder %s33, 0
    %s36 = sadd.s32 %s35, 1
    %s37 = scalar_select %p34, %s35, %s36
    %p40 = pneg %p34
    %p41 = scmp.eq.s32.totalorder %s11, 1
    %p42 = por %p40, %p41
    %p43 = scmp.ne.s32.totalorder %s35, %s38
    %p44 = scmp.eq.s32.totalorder %s11, 0
    %p45 = por %p43, %p44
    %p46 = scmp.ne.s32.totalorder %s35, %s38
    %p47 = scmp.eq.s32.totalorder %s16, 1
    %p48 = por %p46, %p47
    %p49 = scmp.ne.s32.totalorder %s38, %s39
    %p50 = scmp.eq.s32.totalorder %s16, 0
    %p51 = por %p49, %p50
    %p52 = scmp.ne.s32.totalorder %s38, %s39
    %p53 = scmp.eq.s32.totalorder %s17, 1
    %p54 = por %p52, %p53
    %p56 = scmp.ne.s32.totalorder %s39, %s55
    %p57 = scmp.eq.s32.totalorder %s17, 0
    %p58 = por %p56, %p57
    %s59 = ssub.s32 %s19, %s26
    %p60 = scmp.eq.s32.totalorder %s59, 0
    %s62 = sadd.s32 %s61, 1
    %s63 = scalar_select %p60, %s61, %s62
    %p66 = pneg %p60
    %p67 = scmp.eq.s32.totalorder %s11, 1
    %p68 = por %p66, %p67
    %p69 = scmp.ne.s32.totalorder %s61, %s64
    %p70 = scmp.eq.s32.totalorder %s11, 0
    %p71 = por %p69, %p70
    %p72 = scmp.ne.s32.totalorder %s61, %s64
    %p73 = scmp.eq.s32.totalorder %s16, 1
    %p74 = por %p72, %p73
    %p75 = scmp.ne.s32.totalorder %s64, %s65
    %p76 = scmp.eq.s32.totalorder %s16, 0
    %p77 = por %p75, %p76
    %p78 = scmp.ne.s32.totalorder %s64, %s65
    %p79 = scmp.eq.s32.totalorder %s17, 1
    %p80 = por %p78, %p79
    %p82 = scmp.ne.s32.totalorder %s65, %s81
    %p83 = scmp.eq.s32.totalorder %s17, 0
    %p84 = por %p82, %p83
    %s86 = sadd.s32 %s85, 1
    %p89 = scmp.eq.s32.totalorder %s11, 1
    %p90 = scmp.ne.s32.totalorder %s85, %s87
    %p91 = scmp.eq.s32.totalorder %s11, 0
    %p92 = por %p90, %p91
    %p93 = scmp.ne.s32.totalorder %s85, %s87
    %p94 = scmp.eq.s32.totalorder %s16, 1
    %p95 = por %p93, %p94
    %p96 = scmp.ne.s32.totalorder %s87, %s88
    %p97 = scmp.eq.s32.totalorder %s16, 0
    %p98 = por %p96, %p97
    %p99 = scmp.ne.s32.totalorder %s87, %s88
    %p100 = scmp.eq.s32.totalorder %s17, 1
    %p101 = por %p99, %p100
    %p103 = scmp.ne.s32.totalorder %s88, %s102
    %p104 = scmp.eq.s32.totalorder %s17, 0
    %p105 = por %p103, %p104
    %s107 = sadd.s32 %s106, 1
    %p110 = scmp.eq.s32.totalorder %s11, 1
    %p111 = scmp.ne.s32.totalorder %s106, %s108
    %p112 = scmp.eq.s32.totalorder %s11, 0
    %p113 = por %p111, %p112
    %p114 = scmp.ne.s32.totalorder %s106, %s108
    %p115 = scmp.eq.s32.totalorder %s16, 1
    %p116 = por %p114, %p115
    %p117 = scmp.ne.s32.totalorder %s108, %s109
    %p118 = scmp.eq.s32.totalorder %s16, 0
    %p119 = por %p117, %p118
    %p120 = scmp.ne.s32.totalorder %s108, %s109
    %p121 = scmp.eq.s32.totalorder %s17, 1
    %p122 = por %p120, %p121
    %p124 = scmp.ne.s32.totalorder %s109, %s123
    %p125 = scmp.eq.s32.totalorder %s17, 0
    %p126 = por %p124, %p125
    %s128 = sadd.s32 %s127, 1
    %p131 = scmp.eq.s32.totalorder %s11, 1
    %p132 = scmp.ne.s32.totalorder %s127, %s129
    %p133 = scmp.eq.s32.totalorder %s11, 0
    %p134 = por %p132, %p133
    %p135 = scmp.ne.s32.totalorder %s127, %s129
    %p136 = scmp.eq.s32.totalorder %s16, 1
    %p137 = por %p135, %p136
    %p138 = scmp.ne.s32.totalorder %s129, %s130
    %p139 = scmp.eq.s32.totalorder %s16, 0
    %p140 = por %p138, %p139
    %p141 = scmp.ne.s32.totalorder %s129, %s130
    %p142 = scmp.eq.s32.totalorder %s17, 1
    %p143 = por %p141, %p142
    %p145 = scmp.ne.s32.totalorder %s130, %s144
    %p146 = scmp.eq.s32.totalorder %s17, 0
    %p147 = por %p145, %p146
    %s148 = ssub.s32 %s18, %s30
    %s149 = ssub.s32 %s19, %s26
    %s150 = sor.u32 %s148, %s149
    %p151 = scmp.eq.s32.totalorder %s150, 0
    %s153 = sadd.s32 %s152, 1
    %s154 = scalar_select %p151, %s152, %s153
    %p157 = pneg %p151
    %p158 = scmp.eq.s32.totalorder %s11, 1
    %p159 = por %p157, %p158
    %p160 = scmp.ne.s32.totalorder %s152, %s155
    %p161 = scmp.eq.s32.totalorder %s11, 0
    %p162 = por %p160, %p161
    %p163 = scmp.ne.s32.totalorder %s152, %s155
    %p164 = scmp.eq.s32.totalorder %s16, 1
    %p165 = por %p163, %p164
    %p166 = scmp.ne.s32.totalorder %s155, %s156
    %p167 = scmp.eq.s32.totalorder %s16, 0
    %p168 = por %p166, %p167
    %p169 = scmp.ne.s32.totalorder %s155, %s156
    %p170 = scmp.eq.s32.totalorder %s17, 1
    %p171 = por %p169, %p170
    %p173 = scmp.ne.s32.totalorder %s156, %s172
    %p174 = scmp.eq.s32.totalorder %s17, 0
    %p175 = por %p173, %p174
    %p176 = scmp.le.s32.totalorder 1, %s11
    %p177 = scmp.lt.s32.totalorder %s11, 3
    %p178 = pnand %p176, %p177
    %p179 = pneg %p178
    // Predicated region
    $region9: #{protbert_organism_classifier_forward.6} parent=5 // pred_check
      _
    $region10: #{protbert_organism_classifier_forward.6} parent=5 // pred_check_branch
      %181 = sbr.rel (%p178) target = $region12
    $region11: #{protbert_organism_classifier_forward.6} parent=5 // pred_region
      %s182 = ssub.s32 %s11, 1
      // Predicated region
      $region13: #{protbert_organism_classifier_forward.6} parent=11 // pred_check
        %p183 = pneg %p77
      $region14: #{protbert_organism_classifier_forward.6} parent=11 // pred_check_branch
        %185 = sbr.rel (%p183) target = $region16
      $region15: #{protbert_organism_classifier_forward.6} parent=11 // pred_region
        %p186 = scmp.lt.s32.totalorder %s21, 0
        %s187 = scalar_select %p186, %s21, 0
        %s188 = smul.addr %s187, 8
        %s189 = scalar_lea.vmem %s1, %s188
      $region16: #{protbert_organism_classifier_forward.6} parent=11 // pred_fallthru
        _
      // Predicated region
      $region17: #{protbert_organism_classifier_forward.6} parent=11 // pred_check
        %p190 = pneg %p98
      $region18: #{protbert_organism_classifier_forward.6} parent=11 // pred_check_branch
        %192 = sbr.rel (%p190) target = $region20
      $region19: #{protbert_organism_classifier_forward.6} parent=11 // pred_region
        _
      $region20: #{protbert_organism_classifier_forward.6} parent=11 // pred_fallthru
        _
      // Predicated region
      $region21: #{protbert_organism_classifier_forward.6} parent=11 // pred_check
        %p193 = pneg %p119
      $region22: #{protbert_organism_classifier_forward.6} parent=11 // pred_check_branch
        %195 = sbr.rel (%p193) target = $region24
      $region23: #{protbert_organism_classifier_forward.6} parent=11 // pred_region
        _
      $region24: #{protbert_organism_classifier_forward.6} parent=11 // pred_fallthru
        _
      // Predicated region
      $region25: #{protbert_organism_classifier_forward.6} parent=11 // pred_check
        %p196 = pneg %p140
      $region26: #{protbert_organism_classifier_forward.6} parent=11 // pred_check_branch
        %198 = sbr.rel (%p196) target = $region28
      $region27: #{protbert_organism_classifier_forward.6} parent=11 // pred_region
        _
      $region28: #{protbert_organism_classifier_forward.6} parent=11 // pred_fallthru
        _
    $region12: #{protbert_organism_classifier_forward.6} parent=5 // pred_fallthru
      _
    %p199 = scmp.lt.s32.totalorder %s11, 2
    // Predicated region
    $region29: #{protbert_organism_classifier_forward.6} parent=5 // pred_check
      %p200 = pneg %p199
    $region30: #{protbert_organism_classifier_forward.6} parent=5 // pred_check_branch
      %202 = sbr.rel (%p200) target = $region32
    $region31: #{protbert_organism_classifier_forward.6} parent=5 // pred_region
      // Predicated region
      $region33: #{protbert_organism_classifier_forward.6} parent=31 // pred_check
        %p203 = pneg %p45
      $region34: #{protbert_organism_classifier_forward.6} parent=31 // pred_check_branch
        %205 = sbr.rel (%p203) target = $region36
      $region35: #{protbert_organism_classifier_forward.6} parent=31 // pred_region
        %p206 = scmp.lt.s32.totalorder %s18, 1
        %s207 = scalar_select %p206, %s18, 1
        %p208 = scmp.lt.s32.totalorder %s19, 0
        %s209 = scalar_select %p208, %s19, 0
        %s210 = sadd.s32 %s209, %s207
        %s211 = smul.addr %s210, 8
        %s212 = scalar_lea.vmem %s0, %s211
      $region36: #{protbert_organism_classifier_forward.6} parent=31 // pred_fallthru
        _
    $region32: #{protbert_organism_classifier_forward.6} parent=5 // pred_fallthru
      _
    %p213 = scmp.le.s32.totalorder 1, %s11
    %p214 = scmp.lt.s32.totalorder %s11, 3
    %p215 = pnand %p213, %p214
    %p216 = pneg %p215
    // Predicated region
    $region37: #{protbert_organism_classifier_forward.6} parent=5 // pred_check
      _
    $region38: #{protbert_organism_classifier_forward.6} parent=5 // pred_check_branch
      %218 = sbr.rel (%p215) target = $region40
    $region39: #{protbert_organism_classifier_forward.6} parent=5 // pred_region
      %s219 = ssub.s32 %s11, 1
      %p220 = scmp.lt.s32.totalorder %s20, 1
      %s221 = scalar_select %p220, %s20, 1
      %p222 = scmp.lt.s32.totalorder %s21, 0
      %s223 = scalar_select %p222, %s21, 0
      %s224 = sadd.s32 %s223, %s221
      %s225 = smul.addr %s224, 8
      %s226 = scalar_lea.vmem %s0, %s225
      %p227 = pneg %p51
      %p228 = pneg %p48
      %p229 = scmp.lt.s32.totalorder %s21, 0
      %s230 = scalar_select %p229, %s21, 0
      %s231 = smul.addr %s230, 8
      %s232 = scalar_lea.vmem %s1, %s231
      %p233 = pneg %p77
      %p234 = pneg %p74
      %p235 = pneg %p98
      %p236 = pneg %p95
      %p237 = pneg %p119
      %p238 = pneg %p116
      %p239 = pneg %p140
      %p240 = pneg %p137
      %p241 = pneg %p168
      %p242 = pneg %p165
      %p243 = scmp.lt.s32.totalorder %s20, 1
      %s244 = scalar_select %p243, %s20, 1
      %p245 = scmp.lt.s32.totalorder %s21, 0
      %s246 = scalar_select %p245, %s21, 0
      %s247 = sadd.s32 %s246, %s244
      %s248 = smul.addr %s247, 4
      %s249 = scalar_lea.vmem %s5, %s248
      %p250 = scmp.lt.s32.totalorder %s20, 1
      %s251 = scalar_select %p250, %s20, 1
      %p252 = scmp.lt.s32.totalorder %s21, 0
      %s253 = scalar_select %p252, %s21, 0
      %s254 = sadd.s32 %s253, %s251
      %s255 = smul.addr %s254, 8
      %s256 = scalar_lea.vmem %s0, %s255
      %p257 = scmp.lt.s32.totalorder %s21, 0
      %s258 = scalar_select %p257, %s21, 0
      %s259 = smul.addr %s258, 8
      %s260 = scalar_lea.vmem %s1, %s259
      %p261 = scmp.lt.s32.totalorder %s20, 1
      %s262 = scalar_select %p261, %s20, 1
      %p263 = scmp.lt.s32.totalorder %s21, 0
      %s264 = scalar_select %p263, %s21, 0
      %s265 = sadd.s32 %s264, %s262
      %s266 = smul.addr %s265, 4
      %s267 = scalar_lea.vmem %s5, %s266
      %v268 = vld [vmem:[%s256] sm:$0xff]
      %v269 = vld [vmem:[%s260] sm:$0xff]
      %v270 = vadd.f32 %v268, %v269
      %v271 = vld [vmem:[%s2] sm:$0x1]
      %v273 = vperm.slane %v271, 0
      %v275 = vadd.f32 %v270, %v273
      %v276 = vld [vmem:[%s3] sm:$0x1]
      %v277 = vld [vmem:[%s4] sm:$0x1]
      %vm278 = vcmask 261120
      %v279 = vsel %vm278, %v275, 0.0
      %280 = vadd.xlane.f32.xlu0 %v279
      %v281 = vpop.xlane.xlu0 %280
      %v282 = vmul.f32 %v275, %v275
      %v283 = vsel %vm278, %v282, 0.0
      %284 = vadd.xlane.f32.xlu0 %v283
      %v285 = vpop.xlane.xlu0 %284
      %v286 = vmul.f32 %v281, 0.03125
      %v287 = vmul.f32 %v285, 0.03125
      %v288 = vmul.f32 %v286, %v286
      %v289 = vsub.f32 %v287, %v288
      %v290 = vsub.f32 %v275, %v286
      %v291 = vadd.f32 %v289, 1e-12
      %v292 = vrsqrt.pop %v291
      %v293 = vmul.f32 %v292, %v291
      %v294 = vmul.f32 %v293, %v292
      %v295 = vmul.f32 0.5, %v294
      %v296 = vsub.f32 1.5, %v295
      %v297 = vmul.f32 %v292, %v296
      %vm298 = vweird.f32 %v291
      %vm299 = vweird.f32 %v292
      %vm300 = vmor %vm298, %vm299
      %v301 = vsel %vm300, %v292, %v297
      %v302 = vmul.f32 %v290, %v301
      %v304 = vperm.slane %v276, 0
      %v306 = vmul.f32 %v302, %v304
      %v308 = vperm.slane %v277, 0
      %v310 = vadd.f32 %v306, %v308
      %v311 = vpack.c.bf16 %v310, %v310
      %vm312 = vcmask 257024
      %313 = vst.msk [vmem:[%s267] sm:$0xf] %vm312, %v311
      %p314 = scmp.lt.s32.totalorder %s20, 1
      %s315 = scalar_select %p314, %s20, 1
      %p316 = scmp.lt.s32.totalorder %s21, 0
      %s317 = scalar_select %p316, %s21, 0
      %s318 = sadd.s32 %s317, %s315
      %s319 = smul.addr %s318, 4
      %s320 = scalar_lea.vmem %s5, %s319
      // Predicated region
      $region41: #{protbert_organism_classifier_forward.6} parent=39 // pred_check
        %p321 = pneg %p165
      $region42: #{protbert_organism_classifier_forward.6} parent=39 // pred_check_branch
        %323 = sbr.rel (%p321) target = $region44
      $region43: #{protbert_organism_classifier_forward.6} parent=39 // pred_region
        _
      $region44: #{protbert_organism_classifier_forward.6} parent=39 // pred_fallthru
        _
    $region40: #{protbert_organism_classifier_forward.6} parent=5 // pred_fallthru
      _
    %p324 = scmp.le.s32.totalorder 2, %s11
    // Predicated region
    $region45: #{protbert_organism_classifier_forward.6} parent=5 // pred_check
      %p325 = pneg %p324
    $region46: #{protbert_organism_classifier_forward.6} parent=5 // pred_check_branch
      %327 = sbr.rel (%p325) target = $region48
    $region47: #{protbert_organism_classifier_forward.6} parent=5 // pred_region
      %s328 = ssub.s32 %s11, 2
      // Predicated region
      $region49: #{protbert_organism_classifier_forward.6} parent=47 // pred_check
        %p329 = pneg %p171
      $region50: #{protbert_organism_classifier_forward.6} parent=47 // pred_check_branch
        %331 = sbr.rel (%p329) target = $region52
      $region51: #{protbert_organism_classifier_forward.6} parent=47 // pred_region
        %p332 = scmp.lt.s32.totalorder %s22, 1
        %s333 = scalar_select %p332, %s22, 1
        %p334 = scmp.lt.s32.totalorder %s23, 0
        %s335 = scalar_select %p334, %s23, 0
        %s336 = sadd.s32 %s335, %s333
        %s337 = smul.addr %s336, 4
        %s338 = scalar_lea.vmem %s5, %s337
      $region52: #{protbert_organism_classifier_forward.6} parent=47 // pred_fallthru
        _
    $region48: #{protbert_organism_classifier_forward.6} parent=5 // pred_fallthru
      _
  $region6: #{protbert_organism_classifier_forward.6} parent=0 // loop_footer
    %s15 = sadd.s32 1, %s11
  $region7: #{protbert_organism_classifier_forward.6} parent=0 // loop_footer_branch
    %10 = sbr.rel target = $region3
  $region8: #{protbert_organism_classifier_forward.6} parent=0 // loop_exit
    _

// kernel: protbert_organism_classifier_forward.11
$region0: #{protbert_organism_classifier_forward.11}
  #allocation0 [shape = 'u32[]', space=smem, size = 0x4, offset = 0x4, fixed_abs, tag = 'smem constant byte address 0x4 - core index']
  #allocation1 [shape = 'u32[72,128]{1,0:T(1,128)}', space=vmem, size = 0x9000, scoped, tag = 'internal scratch']
  %s0 = inlined_call_operand.vmem [shape: bf16[2,32], index: 0, kind: input, shape index: {}]
  %s1 = inlined_call_operand.vmem [shape: f32[2,32], index: 1, kind: input, shape index: {}]
  %s2 = inlined_call_operand.vmem [shape: bf16[32,6], index: 2, kind: input, shape index: {}]
  %s3 = inlined_call_operand.vmem [shape: bf16[32,6], index: 3, kind: input, shape index: {}]
  %s4 = inlined_call_operand.vmem [shape: f32[1,6], index: 4, kind: input, shape index: {}]
  %s5 = inlined_call_operand.hbm [shape: f32[2,6], index: 5, kind: output, shape index: {}]
  %s6 = sld [smem:[#allocation0]]
  $region30: #{protbert_organism_classifier_forward.11} parent=0
    _
  %s8 = ssub.s32 1, %s6
  %s9 = scalar_select 0, %s8, %s6
  $region1: #{protbert_organism_classifier_forward.11} parent=0
    #allocation2 [shape = 'u8[1024]{0}', space=vmem, size = 0x400, scoped, tag = 'output window, operand 0, single buffered']
    #allocation3 [shape = 's32[1]{0}', space=sflag, size = 0x4, scoped, tag = 'scoped memory for protbert_organism_classifier_forward.11']
    %10 = vsyncpa [#allocation3], 0
    // Predicated region
    $region2: #{protbert_organism_classifier_forward.11} parent=1 // pred_check
      _
    $region3: #{protbert_organism_classifier_forward.11} parent=1 // pred_check_branch
      %12 = sbr.rel (0) target = $region5
    $region4: #{protbert_organism_classifier_forward.11} parent=1 // pred_region
      _
    $region5: #{protbert_organism_classifier_forward.11} parent=1 // pred_fallthru
      _
    // Predicated region
    $region6: #{protbert_organism_classifier_forward.11} parent=1 // pred_check
      _
    $region7: #{protbert_organism_classifier_forward.11} parent=1 // pred_check_branch
      %14 = sbr.rel (0) target = $region9
    $region8: #{protbert_organism_classifier_forward.11} parent=1 // pred_region
      _
    $region9: #{protbert_organism_classifier_forward.11} parent=1 // pred_fallthru
      _
    // Predicated region
    $region10: #{protbert_organism_classifier_forward.11} parent=1 // pred_check
      _
    $region11: #{protbert_organism_classifier_forward.11} parent=1 // pred_check_branch
      %16 = sbr.rel (0) target = $region13
    $region12: #{protbert_organism_classifier_forward.11} parent=1 // pred_region
      _
    $region13: #{protbert_organism_classifier_forward.11} parent=1 // pred_fallthru
      _
    // Predicated region
    $region14: #{protbert_organism_classifier_forward.11} parent=1 // pred_check
      _
    $region15: #{protbert_organism_classifier_forward.11} parent=1 // pred_check_branch
      %18 = sbr.rel (0) target = $region17
    $region16: #{protbert_organism_classifier_forward.11} parent=1 // pred_region
      _
    $region17: #{protbert_organism_classifier_forward.11} parent=1 // pred_fallthru
      _
    // Predicated region
    $region18: #{protbert_organism_classifier_forward.11} parent=1 // pred_check
      _
    $region19: #{protbert_organism_classifier_forward.11} parent=1 // pred_check_branch
      %20 = sbr.rel (0) target = $region21
    $region20: #{protbert_organism_classifier_forward.11} parent=1 // pred_region
      _
    $region21: #{protbert_organism_classifier_forward.11} parent=1 // pred_fallthru
      _
    %v22 = vld [vmem:[%s0] sm:$0x1]
    %v23 = vld [vmem:[%s2] sm:$0xf]
    %v24 = vld [vmem:[%s2 + $0x4] sm:$0xf]
    %v25 = vld [vmem:[%s2 + $0x8] sm:$0xf]
    %v26 = vld [vmem:[%s2 + $0xc] sm:$0xf]
    %v27 = vld [vmem:[%s1] sm:$0x3]
    %v28 = vpack.c.bf16 %v27, %v27
    %v29 = vld [vmem:[%s3] sm:$0xf]
    %v30 = vld [vmem:[%s3 + $0x4] sm:$0xf]
    %v31 = vld [vmem:[%s3 + $0x8] sm:$0xf]
    %v32 = vld [vmem:[%s3 + $0xc] sm:$0xf]
    %v37 = vunpack.c.l.b16 %v29
    %v38 = vunpack.c.l.b16 %v30
    %v39 = vunpack.c.l.b16 %v31
    %v40 = vunpack.c.l.b16 %v32
    %v41 = vpack.c.b16 %v38, %v37
    %v42 = vpack.c.b16 %v40, %v39
    %vm45 = vcmask 261120
    %v47 = vsel %vm45, %v28, 0
    %49 = vmatpush.bf16.msra.mxu0 0
    %50 = vmatpush.bf16.msra.mxu0 0
    %51 = vmatpush.bf16.msra.mxu0 0
    %52 = vmatpush.bf16.msra.mxu0 0
    %53 = vmatpush.bf16.msra.mxu0 0
    %54 = vmatpush.bf16.msra.mxu0 0
    %55 = vmatpush.bf16.msra.mxu0 %v42
    %56 = vmatpush.bf16.msra.mxu0 %v41
    %57 = vmatmul.bf16.gmra.mxu0 %v47
    %v58 = vpop.f32.mrf.mxu0
    %v59 = vadd.f32 0.0, %v58
    %v60 = vpop.f32.mrf.mxu0
    %61 = vdwg.mxu0
    %v66 = vunpack.c.l.b16 %v23
    %v67 = vunpack.c.l.b16 %v24
    %v68 = vunpack.c.l.b16 %v25
    %v69 = vunpack.c.l.b16 %v26
    %v70 = vpack.c.b16 %v67, %v66
    %v71 = vpack.c.b16 %v69, %v68
    %v75 = vsel %vm45, %v22, 0
    %77 = vmatpush.bf16.msra.mxu0 0
    %78 = vmatpush.bf16.msra.mxu0 0
    %79 = vmatpush.bf16.msra.mxu0 0
    %80 = vmatpush.bf16.msra.mxu0 0
    %81 = vmatpush.bf16.msra.mxu0 0
    %82 = vmatpush.bf16.msra.mxu0 0
    %83 = vmatpush.bf16.msra.mxu0 %v71
    %84 = vmatpush.bf16.msra.mxu0 %v70
    %85 = vmatmul.bf16.gmra.mxu0 %v75
    %v86 = vpop.f32.mrf.mxu0
    %v87 = vadd.f32 %v59, %v86
    %v88 = vpop.f32.mrf.mxu0
    %89 = vdwg.mxu0
    %v90 = vld [vmem:[%s4] sm:$0x1]
    %v92 = vperm.slane %v90, 0
    %v94 = vadd.f32 %v87, %v92
    %vm95 = vcmask 41984
    %96 = vst.msk [vmem:[#allocation2] sm:$0x3] %vm95, %v94
    // Predicated region
    $region22: #{protbert_organism_classifier_forward.11} parent=1 // pred_check
      _
    $region23: #{protbert_organism_classifier_forward.11} parent=1 // pred_check_branch
      %98 = sbr.rel (0) target = $region25
    $region24: #{protbert_organism_classifier_forward.11} parent=1 // pred_region
      %100 = vsyncadd [#allocation3], 0
      %s102 = sshll.u32 [#allocation2], 4
      %s103 = int_to_ptr.vmem [resolvable:$true] %s102
      %s104 = sshll.u32 %s5, 4
      %s105 = int_to_ptr.hbm [resolvable:$true] %s104
      %107 = dma.vmem_to_hbm [thread:$0]  %s103, 32, %s105, [#allocation3]
    $region25: #{protbert_organism_classifier_forward.11} parent=1 // pred_fallthru
      _
    // Predicated region
    $region26: #{protbert_organism_classifier_forward.11} parent=1 // pred_check
      _
    $region27: #{protbert_organism_classifier_forward.11} parent=1 // pred_check_branch
      %109 = sbr.rel (0) target = $region29
    $region28: #{protbert_organism_classifier_forward.11} parent=1 // pred_region
      %111 = dma.done [#allocation3], 32
    $region29: #{protbert_organism_classifier_forward.11} parent=1 // pred_fallthru
      _
    %112 = vsyncpa [#allocation3], 1

// kernel: protbert_organism_classifier_forward.7
$region0: #{protbert_organism_classifier_forward.7}
  #allocation0 [shape = 'u32[]', space=smem, size = 0x4, offset = 0x4, fixed_abs, tag = 'smem constant byte address 0x4 - core index']
  #allocation1 [shape = 'u32[72,128]{1,0:T(1,128)}', space=vmem, size = 0x9000, scoped, tag = 'internal scratch']
  #allocation2 [shape = 'f32[8,32]{1,0:T(8,128)}', space=vmem, size = 0x1000, scoped, tag = 'scratch operand']
  %s0 = inlined_call_operand.vmem [shape: bf16[2,8,32], index: 0, kind: input, shape index: {}, may-alias: {0,1}]
  %s1 = inlined_call_operand.vmem [shape: bf16[2,8,32], index: 1, kind: input, shape index: {}, may-alias: {0,1}]
  %s2 = inlined_call_operand.vmem [shape: bf16[1,32,32], index: 2, kind: input, shape index: {}]
  %s3 = inlined_call_operand.vmem [shape: f32[1,1,32], index: 3, kind: input, shape index: {}]
  %s4 = inlined_call_operand.vmem [shape: bf16[1,32,32], index: 4, kind: input, shape index: {}]
  %s5 = inlined_call_operand.vmem [shape: f32[1,1,32], index: 5, kind: input, shape index: {}]
  %s6 = inlined_call_operand.vmem [shape: bf16[1,32,32], index: 6, kind: input, shape index: {}]
  %s7 = inlined_call_operand.vmem [shape: f32[1,1,32], index: 7, kind: input, shape index: {}]
  %s8 = inlined_call_operand.vmem [shape: bf16[1,32,32], index: 8, kind: input, shape index: {}]
  %s9 = inlined_call_operand.vmem [shape: f32[1,32], index: 9, kind: input, shape index: {}]
  %s10 = inlined_call_operand.vmem [shape: f32[1,32], index: 10, kind: input, shape index: {}]
  %s11 = inlined_call_operand.vmem [shape: f32[1,32], index: 11, kind: input, shape index: {}]
  %s12 = inlined_call_operand.vmem [shape: bf16[2,8,32], index: 12, kind: output, shape index: {}]
  %s13 = sld [smem:[#allocation0]]
  $region89: #{protbert_organism_classifier_forward.7} parent=0
    _
  %s15 = ssub.s32 1, %s13
  %s16 = scalar_select 0, %s15, %s13
  loop: start=0, step=1, limit=4
  $region2: #{protbert_organism_classifier_forward.7} parent=0 // loop_pre_header
    _
  $region3: #{protbert_organism_classifier_forward.7} parent=0 // loop_header
    %s18 = sphi 0, %s22
    %p19 = scmp.ge.s32.totalorder %s18, 4
    %s25 = sphi 0, %s44
    %s26 = sphi 0, %s40
    %s27 = sphi 0, %s36
    %s28 = sphi 0, %s25
    %s29 = sphi 0, %s26
    %s30 = sphi 0, %s27
    %s31 = sphi 0, %s28
    %s32 = sphi 0, %s29
    %s33 = sphi 0, %s30
    %s49 = sphi 0, %s51
    %s52 = sphi 0, %s49
    %s53 = sphi 0, %s52
    %s69 = sphi 0, %s53
    %s75 = sphi 0, %s77
    %s78 = sphi 0, %s75
    %s79 = sphi 0, %s78
    %s95 = sphi 0, %s79
    %s101 = sphi 0, %s103
    %s104 = sphi 0, %s101
    %s105 = sphi 0, %s104
    %s121 = sphi 0, %s105
    %s127 = sphi 0, %s129
    %s130 = sphi 0, %s127
    %s131 = sphi 0, %s130
    %s147 = sphi 0, %s131
    %s153 = sphi 0, %s155
    %s156 = sphi 0, %s153
    %s157 = sphi 0, %s156
    %s173 = sphi 0, %s157
    %s179 = sphi 0, %s181
    %s182 = sphi 0, %s179
    %s183 = sphi 0, %s182
    %s199 = sphi 0, %s183
    %s205 = sphi 0, %s207
    %s208 = sphi 0, %s205
    %s209 = sphi 0, %s208
    %s225 = sphi 0, %s209
    %s231 = sphi 0, %s233
    %s234 = sphi 0, %s231
    %s235 = sphi 0, %s234
    %s251 = sphi 0, %s235
    %s257 = sphi 0, %s259
    %s260 = sphi 0, %s257
    %s261 = sphi 0, %s260
    %s277 = sphi 0, %s261
    %s281 = sphi 0, %s281
    %s283 = sphi 0, %s281
    %s284 = sphi 0, %s283
    %s298 = sphi 0, %s284
    %s302 = sphi 0, %s302
    %s304 = sphi 0, %s302
    %s305 = sphi 0, %s304
    %s319 = sphi 0, %s305
    %s323 = sphi 0, %s323
    %s325 = sphi 0, %s323
    %s326 = sphi 0, %s325
    %s340 = sphi 0, %s326
    %s348 = sphi 0, %s350
    %s351 = sphi 0, %s348
    %s352 = sphi 0, %s351
    %s368 = sphi 0, %s352
  $region4: #{protbert_organism_classifier_forward.7} parent=0 // loop_header_branch
    %21 = sbr.rel (%p19) target = $region8
  $region5: #{protbert_organism_classifier_forward.7} parent=0 // loop_body
    %s23 = ssub.s32 %s18, 1
    %s24 = ssub.s32 %s18, 2
    %s34 = sadd.s32 1, %s27
    %p35 = scmp.ge.s32.totalorder %s34, 1
    %s36 = scalar_select %p35, 0, %s34
    %s37 = sadd.s32 1, %s26
    %s38 = scalar_select %p35, %s37, %s26
    %p39 = scmp.ge.s32.totalorder %s38, 1
    %s40 = scalar_select %p39, 0, %s38
    %s41 = sadd.s32 1, %s25
    %s42 = scalar_select %p39, %s41, %s25
    %p43 = scmp.ge.s32.totalorder %s42, 2
    %s44 = scalar_select %p43, 0, %s42
    %s45 = ssub.s32 %s25, %s44
    %s46 = ssub.s32 %s26, %s40
    %s47 = sor.u32 %s45, %s46
    %p48 = scmp.eq.s32.totalorder %s47, 0
    %s50 = sadd.s32 %s49, 1
    %s51 = scalar_select %p48, %s49, %s50
    %p54 = pneg %p48
    %p55 = scmp.eq.s32.totalorder %s18, 1
    %p56 = por %p54, %p55
    %p57 = scmp.ne.s32.totalorder %s49, %s52
    %p58 = scmp.eq.s32.totalorder %s18, 0
    %p59 = por %p57, %p58
    %p60 = scmp.ne.s32.totalorder %s49, %s52
    %p61 = scmp.eq.s32.totalorder %s23, 1
    %p62 = por %p60, %p61
    %p63 = scmp.ne.s32.totalorder %s52, %s53
    %p64 = scmp.eq.s32.totalorder %s23, 0
    %p65 = por %p63, %p64
    %p66 = scmp.ne.s32.totalorder %s52, %s53
    %p67 = scmp.eq.s32.totalorder %s24, 1
    %p68 = por %p66, %p67
    %p70 = scmp.ne.s32.totalorder %s53, %s69
    %p71 = scmp.eq.s32.totalorder %s24, 0
    %p72 = por %p70, %p71
    %s73 = ssub.s32 %s25, %s44
    %p74 = scmp.eq.s32.totalorder %s73, 0
    %s76 = sadd.s32 %s75, 1
    %s77 = scalar_select %p74, %s75, %s76
    %p80 = pneg %p74
    %p81 = scmp.eq.s32.totalorder %s18, 1
    %p82 = por %p80, %p81
    %p83 = scmp.ne.s32.totalorder %s75, %s78
    %p84 = scmp.eq.s32.totalorder %s18, 0
    %p85 = por %p83, %p84
    %p86 = scmp.ne.s32.totalorder %s75, %s78
    %p87 = scmp.eq.s32.totalorder %s23, 1
    %p88 = por %p86, %p87
    %p89 = scmp.ne.s32.totalorder %s78, %s79
    %p90 = scmp.eq.s32.totalorder %s23, 0
    %p91 = por %p89, %p90
    %p92 = scmp.ne.s32.totalorder %s78, %s79
    %p93 = scmp.eq.s32.totalorder %s24, 1
    %p94 = por %p92, %p93
    %p96 = scmp.ne.s32.totalorder %s79, %s95
    %p97 = scmp.eq.s32.totalorder %s24, 0
    %p98 = por %p96, %p97
    %s99 = ssub.s32 %s27, %s36
    %p100 = scmp.eq.s32.totalorder %s99, 0
    %s102 = sadd.s32 %s101, 1
    %s103 = scalar_select %p100, %s101, %s102
    %p106 = pneg %p100
    %p107 = scmp.eq.s32.totalorder %s18, 1
    %p108 = por %p106, %p107
    %p109 = scmp.ne.s32.totalorder %s101, %s104
    %p110 = scmp.eq.s32.totalorder %s18, 0
    %p111 = por %p109, %p110
    %p112 = scmp.ne.s32.totalorder %s101, %s104
    %p113 = scmp.eq.s32.totalorder %s23, 1
    %p114 = por %p112, %p113
    %p115 = scmp.ne.s32.totalorder %s104, %s105
    %p116 = scmp.eq.s32.totalorder %s23, 0
    %p117 = por %p115, %p116
    %p118 = scmp.ne.s32.totalorder %s104, %s105
    %p119 = scmp.eq.s32.totalorder %s24, 1
    %p120 = por %p118, %p119
    %p122 = scmp.ne.s32.totalorder %s105, %s121
    %p123 = scmp.eq.s32.totalorder %s24, 0
    %p124 = por %p122, %p123
    %s125 = ssub.s32 %s27, %s36
    %p126 = scmp.eq.s32.totalorder %s125, 0
    %s128 = sadd.s32 %s127, 1
    %s129 = scalar_select %p126, %s127, %s128
    %p132 = pneg %p126
    %p133 = scmp.eq.s32.totalorder %s18, 1
    %p134 = por %p132, %p133
    %p135 = scmp.ne.s32.totalorder %s127, %s130
    %p136 = scmp.eq.s32.totalorder %s18, 0
    %p137 = por %p135, %p136
    %p138 = scmp.ne.s32.totalorder %s127, %s130
    %p139 = scmp.eq.s32.totalorder %s23, 1
    %p140 = por %p138, %p139
    %p141 = scmp.ne.s32.totalorder %s130, %s131
    %p142 = scmp.eq.s32.totalorder %s23, 0
    %p143 = por %p141, %p142
    %p144 = scmp.ne.s32.totalorder %s130, %s131
    %p145 = scmp.eq.s32.totalorder %s24, 1
    %p146 = por %p144, %p145
    %p148 = scmp.ne.s32.totalorder %s131, %s147
    %p149 = scmp.eq.s32.totalorder %s24, 0
    %p150 = por %p148, %p149
    %s151 = ssub.s32 %s27, %s36
    %p152 = scmp.eq.s32.totalorder %s151, 0
    %s154 = sadd.s32 %s153, 1
    %s155 = scalar_select %p152, %s153, %s154
    %p158 = pneg %p152
    %p159 = scmp.eq.s32.totalorder %s18, 1
    %p160 = por %p158, %p159
    %p161 = scmp.ne.s32.totalorder %s153, %s156
    %p162 = scmp.eq.s32.totalorder %s18, 0
    %p163 = por %p161, %p162
    %p164 = scmp.ne.s32.totalorder %s153, %s156
    %p165 = scmp.eq.s32.totalorder %s23, 1
    %p166 = por %p164, %p165
    %p167 = scmp.ne.s32.totalorder %s156, %s157
    %p168 = scmp.eq.s32.totalorder %s23, 0
    %p169 = por %p167, %p168
    %p170 = scmp.ne.s32.totalorder %s156, %s157
    %p171 = scmp.eq.s32.totalorder %s24, 1
    %p172 = por %p170, %p171
    %p174 = scmp.ne.s32.totalorder %s157, %s173
    %p175 = scmp.eq.s32.totalorder %s24, 0
    %p176 = por %p174, %p175
    %s177 = ssub.s32 %s27, %s36
    %p178 = scmp.eq.s32.totalorder %s177, 0
    %s180 = sadd.s32 %s179, 1
    %s181 = scalar_select %p178, %s179, %s180
    %p184 = pneg %p178
    %p185 = scmp.eq.s32.totalorder %s18, 1
    %p186 = por %p184, %p185
    %p187 = scmp.ne.s32.totalorder %s179, %s182
    %p188 = scmp.eq.s32.totalorder %s18, 0
    %p189 = por %p187, %p188
    %p190 = scmp.ne.s32.totalorder %s179, %s182
    %p191 = scmp.eq.s32.totalorder %s23, 1
    %p192 = por %p190, %p191
    %p193 = scmp.ne.s32.totalorder %s182, %s183
    %p194 = scmp.eq.s32.totalorder %s23, 0
    %p195 = por %p193, %p194
    %p196 = scmp.ne.s32.totalorder %s182, %s183
    %p197 = scmp.eq.s32.totalorder %s24, 1
    %p198 = por %p196, %p197
    %p200 = scmp.ne.s32.totalorder %s183, %s199
    %p201 = scmp.eq.s32.totalorder %s24, 0
    %p202 = por %p200, %p201
    %s203 = ssub.s32 %s27, %s36
    %p204 = scmp.eq.s32.totalorder %s203, 0
    %s206 = sadd.s32 %s205, 1
    %s207 = scalar_select %p204, %s205, %s206
    %p210 = pneg %p204
    %p211 = scmp.eq.s32.totalorder %s18, 1
    %p212 = por %p210, %p211
    %p213 = scmp.ne.s32.totalorder %s205, %s208
    %p214 = scmp.eq.s32.totalorder %s18, 0
    %p215 = por %p213, %p214
    %p216 = scmp.ne.s32.totalorder %s205, %s208
    %p217 = scmp.eq.s32.totalorder %s23, 1
    %p218 = por %p216, %p217
    %p219 = scmp.ne.s32.totalorder %s208, %s209
    %p220 = scmp.eq.s32.totalorder %s23, 0
    %p221 = por %p219, %p220
    %p222 = scmp.ne.s32.totalorder %s208, %s209
    %p223 = scmp.eq.s32.totalorder %s24, 1
    %p224 = por %p222, %p223
    %p226 = scmp.ne.s32.totalorder %s209, %s225
    %p227 = scmp.eq.s32.totalorder %s24, 0
    %p228 = por %p226, %p227
    %s229 = ssub.s32 %s27, %s36
    %p230 = scmp.eq.s32.totalorder %s229, 0
    %s232 = sadd.s32 %s231, 1
    %s233 = scalar_select %p230, %s231, %s232
    %p236 = pneg %p230
    %p237 = scmp.eq.s32.totalorder %s18, 1
    %p238 = por %p236, %p237
    %p239 = scmp.ne.s32.totalorder %s231, %s234
    %p240 = scmp.eq.s32.totalorder %s18, 0
    %p241 = por %p239, %p240
    %p242 = scmp.ne.s32.totalorder %s231, %s234
    %p243 = scmp.eq.s32.totalorder %s23, 1
    %p244 = por %p242, %p243
    %p245 = scmp.ne.s32.totalorder %s234, %s235
    %p246 = scmp.eq.s32.totalorder %s23, 0
    %p247 = por %p245, %p246
    %p248 = scmp.ne.s32.totalorder %s234, %s235
    %p249 = scmp.eq.s32.totalorder %s24, 1
    %p250 = por %p248, %p249
    %p252 = scmp.ne.s32.totalorder %s235, %s251
    %p253 = scmp.eq.s32.totalorder %s24, 0
    %p254 = por %p252, %p253
    %s255 = ssub.s32 %s27, %s36
    %p256 = scmp.eq.s32.totalorder %s255, 0
    %s258 = sadd.s32 %s257, 1
    %s259 = scalar_select %p256, %s257, %s258
    %p262 = pneg %p256
    %p263 = scmp.eq.s32.totalorder %s18, 1
    %p264 = por %p262, %p263
    %p265 = scmp.ne.s32.totalorder %s257, %s260
    %p266 = scmp.eq.s32.totalorder %s18, 0
    %p267 = por %p265, %p266
    %p268 = scmp.ne.s32.totalorder %s257, %s260
    %p269 = scmp.eq.s32.totalorder %s23, 1
    %p270 = por %p268, %p269
    %p271 = scmp.ne.s32.totalorder %s260, %s261
    %p272 = scmp.eq.s32.totalorder %s23, 0
    %p273 = por %p271, %p272
    %p274 = scmp.ne.s32.totalorder %s260, %s261
    %p275 = scmp.eq.s32.totalorder %s24, 1
    %p276 = por %p274, %p275
    %p278 = scmp.ne.s32.totalorder %s261, %s277
    %p279 = scmp.eq.s32.totalorder %s24, 0
    %p280 = por %p278, %p279
    %s282 = sadd.s32 %s281, 1
    %p285 = scmp.eq.s32.totalorder %s18, 1
    %p286 = scmp.ne.s32.totalorder %s281, %s283
    %p287 = scmp.eq.s32.totalorder %s18, 0
    %p288 = por %p286, %p287
    %p289 = scmp.ne.s32.totalorder %s281, %s283
    %p290 = scmp.eq.s32.totalorder %s23, 1
    %p291 = por %p289, %p290
    %p292 = scmp.ne.s32.totalorder %s283, %s284
    %p293 = scmp.eq.s32.totalorder %s23, 0
    %p294 = por %p292, %p293
    %p295 = scmp.ne.s32.totalorder %s283, %s284
    %p296 = scmp.eq.s32.totalorder %s24, 1
    %p297 = por %p295, %p296
    %p299 = scmp.ne.s32.totalorder %s284, %s298
    %p300 = scmp.eq.s32.totalorder %s24, 0
    %p301 = por %p299, %p300
    %s303 = sadd.s32 %s302, 1
    %p306 = scmp.eq.s32.totalorder %s18, 1
    %p307 = scmp.ne.s32.totalorder %s302, %s304
    %p308 = scmp.eq.s32.totalorder %s18, 0
    %p309 = por %p307, %p308
    %p310 = scmp.ne.s32.totalorder %s302, %s304
    %p311 = scmp.eq.s32.totalorder %s23, 1
    %p312 = por %p310, %p311
    %p313 = scmp.ne.s32.totalorder %s304, %s305
    %p314 = scmp.eq.s32.totalorder %s23, 0
    %p315 = por %p313, %p314
    %p316 = scmp.ne.s32.totalorder %s304, %s305
    %p317 = scmp.eq.s32.totalorder %s24, 1
    %p318 = por %p316, %p317
    %p320 = scmp.ne.s32.totalorder %s305, %s319
    %p321 = scmp.eq.s32.totalorder %s24, 0
    %p322 = por %p320, %p321
    %s324 = sadd.s32 %s323, 1
    %p327 = scmp.eq.s32.totalorder %s18, 1
    %p328 = scmp.ne.s32.totalorder %s323, %s325
    %p329 = scmp.eq.s32.totalorder %s18, 0
    %p330 = por %p328, %p329
    %p331 = scmp.ne.s32.totalorder %s323, %s325
    %p332 = scmp.eq.s32.totalorder %s23, 1
    %p333 = por %p331, %p332
    %p334 = scmp.ne.s32.totalorder %s325, %s326
    %p335 = scmp.eq.s32.totalorder %s23, 0
    %p336 = por %p334, %p335
    %p337 = scmp.ne.s32.totalorder %s325, %s326
    %p338 = scmp.eq.s32.totalorder %s24, 1
    %p339 = por %p337, %p338
    %p341 = scmp.ne.s32.totalorder %s326, %s340
    %p342 = scmp.eq.s32.totalorder %s24, 0
    %p343 = por %p341, %p342
    %s344 = ssub.s32 %s25, %s44
    %s345 = ssub.s32 %s26, %s40
    %s346 = sor.u32 %s344, %s345
    %p347 = scmp.eq.s32.totalorder %s346, 0
    %s349 = sadd.s32 %s348, 1
    %s350 = scalar_select %p347, %s348, %s349
    %p353 = pneg %p347
    %p354 = scmp.eq.s32.totalorder %s18, 1
    %p355 = por %p353, %p354
    %p356 = scmp.ne.s32.totalorder %s348, %s351
    %p357 = scmp.eq.s32.totalorder %s18, 0
    %p358 = por %p356, %p357
    %p359 = scmp.ne.s32.totalorder %s348, %s351
    %p360 = scmp.eq.s32.totalorder %s23, 1
    %p361 = por %p359, %p360
    %p362 = scmp.ne.s32.totalorder %s351, %s352
    %p363 = scmp.eq.s32.totalorder %s23, 0
    %p364 = por %p362, %p363
    %p365 = scmp.ne.s32.totalorder %s351, %s352
    %p366 = scmp.eq.s32.totalorder %s24, 1
    %p367 = por %p365, %p366
    %p369 = scmp.ne.s32.totalorder %s352, %s368
    %p370 = scmp.eq.s32.totalorder %s24, 0
    %p371 = por %p369, %p370
    %p372 = scmp.le.s32.totalorder 1, %s18
    %p373 = scmp.lt.s32.totalorder %s18, 3
    %p374 = pnand %p372, %p373
    %p375 = pneg %p374
    // Predicated region
    $region9: #{protbert_organism_classifier_forward.7} parent=5 // pred_check
      _
    $region10: #{protbert_organism_classifier_forward.7} parent=5 // pred_check_branch
      %377 = sbr.rel (%p374) target = $region12
    $region11: #{protbert_organism_classifier_forward.7} parent=5 // pred_region
      %s378 = ssub.s32 %s18, 1
      // Predicated region
      $region13: #{protbert_organism_classifier_forward.7} parent=11 // pred_check
        %p379 = pneg %p117
      $region14: #{protbert_organism_classifier_forward.7} parent=11 // pred_check_branch
        %381 = sbr.rel (%p379) target = $region16
      $region15: #{protbert_organism_classifier_forward.7} parent=11 // pred_region
        %p382 = scmp.lt.s32.totalorder %s30, 0
        %s383 = scalar_select %p382, %s30, 0
        %s384 = smul.addr %s383, 4
        %s385 = smul.addr %s384, 4
        %s386 = scalar_lea.vmem %s2, %s385
      $region16: #{protbert_organism_classifier_forward.7} parent=11 // pred_fallthru
        _
      // Predicated region
      $region17: #{protbert_organism_classifier_forward.7} parent=11 // pred_check
        %p387 = pneg %p143
      $region18: #{protbert_organism_classifier_forward.7} parent=11 // pred_check_branch
        %389 = sbr.rel (%p387) target = $region20
      $region19: #{protbert_organism_classifier_forward.7} parent=11 // pred_region
        %p390 = scmp.lt.s32.totalorder %s30, 0
        %s391 = scalar_select %p390, %s30, 0
        %s392 = scalar_lea.vmem %s3, %s391
      $region20: #{protbert_organism_classifier_forward.7} parent=11 // pred_fallthru
        _
      // Predicated region
      $region21: #{protbert_organism_classifier_forward.7} parent=11 // pred_check
        %p393 = pneg %p169
      $region22: #{protbert_organism_classifier_forward.7} parent=11 // pred_check_branch
        %395 = sbr.rel (%p393) target = $region24
      $region23: #{protbert_organism_classifier_forward.7} parent=11 // pred_region
        %p396 = scmp.lt.s32.totalorder %s30, 0
        %s397 = scalar_select %p396, %s30, 0
        %s398 = smul.addr %s397, 4
        %s399 = smul.addr %s398, 4
        %s400 = scalar_lea.vmem %s4, %s399
      $region24: #{protbert_organism_classifier_forward.7} parent=11 // pred_fallthru
        _
      // Predicated region
      $region25: #{protbert_organism_classifier_forward.7} parent=11 // pred_check
        %p401 = pneg %p195
      $region26: #{protbert_organism_classifier_forward.7} parent=11 // pred_check_branch
        %403 = sbr.rel (%p401) target = $region28
      $region27: #{protbert_organism_classifier_forward.7} parent=11 // pred_region
        %p404 = scmp.lt.s32.totalorder %s30, 0
        %s405 = scalar_select %p404, %s30, 0
        %s406 = scalar_lea.vmem %s5, %s405
      $region28: #{protbert_organism_classifier_forward.7} parent=11 // pred_fallthru
        _
      // Predicated region
      $region29: #{protbert_organism_classifier_forward.7} parent=11 // pred_check
        %p407 = pneg %p221
      $region30: #{protbert_organism_classifier_forward.7} parent=11 // pred_check_branch
        %409 = sbr.rel (%p407) target = $region32
      $region31: #{protbert_organism_classifier_forward.7} parent=11 // pred_region
        %p410 = scmp.lt.s32.totalorder %s30, 0
        %s411 = scalar_select %p410, %s30, 0
        %s412 = smul.addr %s411, 4
        %s413 = smul.addr %s412, 4
        %s414 = scalar_lea.vmem %s6, %s413
      $region32: #{protbert_organism_classifier_forward.7} parent=11 // pred_fallthru
        _
      // Predicated region
      $region33: #{protbert_organism_classifier_forward.7} parent=11 // pred_check
        %p415 = pneg %p247
      $region34: #{protbert_organism_classifier_forward.7} parent=11 // pred_check_branch
        %417 = sbr.rel (%p415) target = $region36
      $region35: #{protbert_organism_classifier_forward.7} parent=11 // pred_region
        %p418 = scmp.lt.s32.totalorder %s30, 0
        %s419 = scalar_select %p418, %s30, 0
        %s420 = scalar_lea.vmem %s7, %s419
      $region36: #{protbert_organism_classifier_forward.7} parent=11 // pred_fallthru
        _
      // Predicated region
      $region37: #{protbert_organism_classifier_forward.7} parent=11 // pred_check
        %p421 = pneg %p273
      $region38: #{protbert_organism_classifier_forward.7} parent=11 // pred_check_branch
        %423 = sbr.rel (%p421) target = $region40
      $region39: #{protbert_organism_classifier_forward.7} parent=11 // pred_region
        %p424 = scmp.lt.s32.totalorder %s30, 0
        %s425 = scalar_select %p424, %s30, 0
        %s426 = smul.addr %s425, 4
        %s427 = smul.addr %s426, 4
        %s428 = scalar_lea.vmem %s8, %s427
      $region40: #{protbert_organism_classifier_forward.7} parent=11 // pred_fallthru
        _
      // Predicated region
      $region41: #{protbert_organism_classifier_forward.7} parent=11 // pred_check
        %p429 = pneg %p294
      $region42: #{protbert_organism_classifier_forward.7} parent=11 // pred_check_branch
        %431 = sbr.rel (%p429) target = $region44
      $region43: #{protbert_organism_classifier_forward.7} parent=11 // pred_region
        _
      $region44: #{protbert_organism_classifier_forward.7} parent=11 // pred_fallthru
        _
      // Predicated region
      $region45: #{protbert_organism_classifier_forward.7} parent=11 // pred_check
        %p432 = pneg %p315
      $region46: #{protbert_organism_classifier_forward.7} parent=11 // pred_check_branch
        %434 = sbr.rel (%p432) target = $region48
      $region47: #{protbert_organism_classifier_forward.7} parent=11 // pred_region
        _
      $region48: #{protbert_organism_classifier_forward.7} parent=11 // pred_fallthru
        _
      // Predicated region
      $region49: #{protbert_organism_classifier_forward.7} parent=11 // pred_check
        %p435 = pneg %p336
      $region50: #{protbert_organism_classifier_forward.7} parent=11 // pred_check_branch
        %437 = sbr.rel (%p435) target = $region52
      $region51: #{protbert_organism_classifier_forward.7} parent=11 // pred_region
        _
      $region52: #{protbert_organism_classifier_forward.7} parent=11 // pred_fallthru
        _
    $region12: #{protbert_organism_classifier_forward.7} parent=5 // pred_fallthru
      _
    %p438 = scmp.lt.s32.totalorder %s18, 2
    // Predicated region
    $region53: #{protbert_organism_classifier_forward.7} parent=5 // pred_check
      %p439 = pneg %p438
    $region54: #{protbert_organism_classifier_forward.7} parent=5 // pred_check_branch
      %441 = sbr.rel (%p439) target = $region56
    $region55: #{protbert_organism_classifier_forward.7} parent=5 // pred_region
      // Predicated region
      $region57: #{protbert_organism_classifier_forward.7} parent=55 // pred_check
        %p442 = pneg %p59
      $region58: #{protbert_organism_classifier_forward.7} parent=55 // pred_check_branch
        %444 = sbr.rel (%p442) target = $region60
      $region59: #{protbert_organism_classifier_forward.7} parent=55 // pred_region
        %p445 = scmp.lt.s32.totalorder %s25, 1
        %s446 = scalar_select %p445, %s25, 1
        %p447 = scmp.lt.s32.totalorder %s26, 0
        %s448 = scalar_select %p447, %s26, 0
        %s449 = sadd.s32 %s448, %s446
        %s450 = smul.addr %s449, 4
        %s451 = scalar_lea.vmem %s0, %s450
      $region60: #{protbert_organism_classifier_forward.7} parent=55 // pred_fallthru
        _
      // Predicated region
      $region61: #{protbert_organism_classifier_forward.7} parent=55 // pred_check
        %p452 = pneg %p85
      $region62: #{protbert_organism_classifier_forward.7} parent=55 // pred_check_branch
        %454 = sbr.rel (%p452) target = $region64
      $region63: #{protbert_organism_classifier_forward.7} parent=55 // pred_region
        %p455 = scmp.lt.s32.totalorder %s25, 1
        %s456 = scalar_select %p455, %s25, 1
        %s457 = smul.addr %s456, 4
        %s458 = scalar_lea.vmem %s1, %s457
      $region64: #{protbert_organism_classifier_forward.7} parent=55 // pred_fallthru
        _
    $region56: #{protbert_organism_classifier_forward.7} parent=5 // pred_fallthru
      _
    %p459 = scmp.le.s32.totalorder 1, %s18
    %p460 = scmp.lt.s32.totalorder %s18, 3
    %p461 = pnand %p459, %p460
    %p462 = pneg %p461
    // Predicated region
    $region65: #{protbert_organism_classifier_forward.7} parent=5 // pred_check
      _
    $region66: #{protbert_organism_classifier_forward.7} parent=5 // pred_check_branch
      %464 = sbr.rel (%p461) target = $region68
    $region67: #{protbert_organism_classifier_forward.7} parent=5 // pred_region
      %s465 = ssub.s32 %s18, 1
      %p466 = scmp.lt.s32.totalorder %s28, 1
      %s467 = scalar_select %p466, %s28, 1
      %p468 = scmp.lt.s32.totalorder %s29, 0
      %s469 = scalar_select %p468, %s29, 0
      %s470 = sadd.s32 %s469, %s467
      %s471 = smul.addr %s470, 4
      %s472 = scalar_lea.vmem %s0, %s471
      %p473 = pneg %p65
      %p474 = pneg %p62
      %p475 = scmp.lt.s32.totalorder %s28, 1
      %s476 = scalar_select %p475, %s28, 1
      %s477 = smul.addr %s476, 4
      %s478 = scalar_lea.vmem %s1, %s477
      %p479 = pneg %p91
      %p480 = pneg %p88
      %p481 = scmp.lt.s32.totalorder %s30, 0
      %s482 = scalar_select %p481, %s30, 0
      %s483 = smul.addr %s482, 4
      %s484 = smul.addr %s483, 4
      %s485 = scalar_lea.vmem %s2, %s484
      %p486 = pneg %p117
      %p487 = pneg %p114
      %p488 = scmp.lt.s32.totalorder %s30, 0
      %s489 = scalar_select %p488, %s30, 0
      %s490 = scalar_lea.vmem %s3, %s489
      %p491 = pneg %p143
      %p492 = pneg %p140
      %p493 = scmp.lt.s32.totalorder %s30, 0
      %s494 = scalar_select %p493, %s30, 0
      %s495 = smul.addr %s494, 4
      %s496 = smul.addr %s495, 4
      %s497 = scalar_lea.vmem %s4, %s496
      %p498 = pneg %p169
      %p499 = pneg %p166
      %p500 = scmp.lt.s32.totalorder %s30, 0
      %s501 = scalar_select %p500, %s30, 0
      %s502 = scalar_lea.vmem %s5, %s501
      %p503 = pneg %p195
      %p504 = pneg %p192
      %p505 = scmp.lt.s32.totalorder %s30, 0
      %s506 = scalar_select %p505, %s30, 0
      %s507 = smul.addr %s506, 4
      %s508 = smul.addr %s507, 4
      %s509 = scalar_lea.vmem %s6, %s508
      %p510 = pneg %p221
      %p511 = pneg %p218
      %p512 = scmp.lt.s32.totalorder %s30, 0
      %s513 = scalar_select %p512, %s30, 0
      %s514 = scalar_lea.vmem %s7, %s513
      %p515 = pneg %p247
      %p516 = pneg %p244
      %p517 = scmp.lt.s32.totalorder %s30, 0
      %s518 = scalar_select %p517, %s30, 0
      %s519 = smul.addr %s518, 4
      %s520 = smul.addr %s519, 4
      %s521 = scalar_lea.vmem %s8, %s520
      %p522 = pneg %p273
      %p523 = pneg %p270
      %p524 = pneg %p294
      %p525 = pneg %p291
      %p526 = pneg %p315
      %p527 = pneg %p312
      %p528 = pneg %p336
      %p529 = pneg %p333
      %p530 = pneg %p364
      %p531 = pneg %p361
      %p532 = scmp.lt.s32.totalorder %s28, 1
      %s533 = scalar_select %p532, %s28, 1
      %p534 = scmp.lt.s32.totalorder %s29, 0
      %s535 = scalar_select %p534, %s29, 0
      %s536 = sadd.s32 %s535, %s533
      %s537 = smul.addr %s536, 4
      %s538 = scalar_lea.vmem %s12, %s537
      %p539 = scmp.lt.s32.totalorder %s28, 1
      %s540 = scalar_select %p539, %s28, 1
      %p541 = scmp.lt.s32.totalorder %s29, 0
      %s542 = scalar_select %p541, %s29, 0
      %s543 = sadd.s32 %s542, %s540
      %s544 = smul.addr %s543, 4
      %s545 = scalar_lea.vmem %s0, %s544
      %p546 = scmp.lt.s32.totalorder %s28, 1
      %s547 = scalar_select %p546, %s28, 1
      %s548 = smul.addr %s547, 4
      %s549 = scalar_lea.vmem %s1, %s548
      %p550 = scmp.lt.s32.totalorder %s30, 0
      %s551 = scalar_select %p550, %s30, 0
      %s552 = smul.addr %s551, 4
      %s553 = smul.addr %s552, 4
      %s554 = scalar_lea.vmem %s2, %s553
      %p555 = scmp.lt.s32.totalorder %s30, 0
      %s556 = scalar_select %p555, %s30, 0
      %s557 = scalar_lea.vmem %s3, %s556
      %p558 = scmp.lt.s32.totalorder %s30, 0
      %s559 = scalar_select %p558, %s30, 0
      %s560 = smul.addr %s559, 4
      %s561 = smul.addr %s560, 4
      %s562 = scalar_lea.vmem %s4, %s561
      %p563 = scmp.lt.s32.totalorder %s30, 0
      %s564 = scalar_select %p563, %s30, 0
      %s565 = scalar_lea.vmem %s5, %s564
      %p566 = scmp.lt.s32.totalorder %s30, 0
      %s567 = scalar_select %p566, %s30, 0
      %s568 = smul.addr %s567, 4
      %s569 = smul.addr %s568, 4
      %s570 = scalar_lea.vmem %s6, %s569
      %p571 = scmp.lt.s32.totalorder %s30, 0
      %s572 = scalar_select %p571, %s30, 0
      %s573 = scalar_lea.vmem %s7, %s572
      %p574 = scmp.lt.s32.totalorder %s30, 0
      %s575 = scalar_select %p574, %s30, 0
      %s576 = smul.addr %s575, 4
      %s577 = smul.addr %s576, 4
      %s578 = scalar_lea.vmem %s8, %s577
      %p579 = scmp.lt.s32.totalorder %s28, 1
      %s580 = scalar_select %p579, %s28, 1
      %p581 = scmp.lt.s32.totalorder %s29, 0
      %s582 = scalar_select %p581, %s29, 0
      %s583 = sadd.s32 %s582, %s580
      %s584 = smul.addr %s583, 4
      %s585 = scalar_lea.vmem %s12, %s584
      %p587 = scmp.eq.s32.totalorder %s30, 0
      // Predicated region
      $region69: #{protbert_organism_classifier_forward.7} parent=67 // pred_check
        %p588 = pneg %p587
      $region70: #{protbert_organism_classifier_forward.7} parent=67 // pred_check_branch
        %590 = sbr.rel (%p588) target = $region72
      $region71: #{protbert_organism_classifier_forward.7} parent=67 // pred_region
        %vm591 = vcmask 261120
        %592 = vst.msk [vmem:[#allocation2] sm:$0xff] %vm591, 0.0
      $region72: #{protbert_organism_classifier_forward.7} parent=67 // pred_fallthru
        _
      %v593 = vld [vmem:[%s545] sm:$0xf]
      %v594 = vld [vmem:[%s549] sm:$0xf]
      %v595 = vld [vmem:[%s554] sm:$0xf]
      %v596 = vld [vmem:[%s554 + $0x4] sm:$0xf]
      %v597 = vld [vmem:[%s554 + $0x8] sm:$0xf]
      %v598 = vld [vmem:[%s554 + $0xc] sm:$0xf]
      %v599 = vld [vmem:[%s562] sm:$0xf]
      %v600 = vld [vmem:[%s562 + $0x4] sm:$0xf]
      %v601 = vld [vmem:[%s562 + $0x8] sm:$0xf]
      %v602 = vld [vmem:[%s562 + $0xc] sm:$0xf]
      %v603 = vld [vmem:[%s570] sm:$0xf]
      %v604 = vld [vmem:[%s570 + $0x4] sm:$0xf]
      %v605 = vld [vmem:[%s570 + $0x8] sm:$0xf]
      %v606 = vld [vmem:[%s570 + $0xc] sm:$0xf]
      %v607 = vld [vmem:[%s578] sm:$0xf]
      %v608 = vld [vmem:[%s578 + $0x4] sm:$0xf]
      %v609 = vld [vmem:[%s578 + $0x8] sm:$0xf]
      %v610 = vld [vmem:[%s578 + $0xc] sm:$0xf]
      %v611 = vld [vmem:[%s557] sm:$0x1]
      %v613 = vperm.slane %v611, 0
      %v619 = vunpack.c.l.b16 %v595
      %v620 = vunpack.c.l.b16 %v596
      %v621 = vunpack.c.l.b16 %v597
      %v622 = vunpack.c.l.b16 %v598
      %v623 = vpack.c.b16 %v620, %v619
      %v624 = vpack.c.b16 %v622, %v621
      %vm627 = vcmask 261120
      %v629 = vsel %vm627, %v593, 0
      %631 = vmatpush.bf16.msra.mxu0 0
      %632 = vmatpush.bf16.msra.mxu0 0
      %633 = vmatpush.bf16.msra.mxu0 0
      %634 = vmatpush.bf16.msra.mxu0 0
      %635 = vmatpush.bf16.msra.mxu0 0
      %636 = vmatpush.bf16.msra.mxu0 0
      %637 = vmatpush.bf16.msra.mxu0 %v624
      %638 = vmatpush.bf16.msra.mxu0 %v623
      %639 = vmatmul.bf16.gmra.mxu0 %v629
      %v640 = vpop.f32.mrf.mxu0
      %v641 = vadd.f32 %v613, %v640
      %v642 = vpop.f32.mrf.mxu0
      %643 = vdwg.mxu0
      %v644 = vld [vmem:[%s565] sm:$0x1]
      %v646 = vperm.slane %v644, 0
      %v652 = vunpack.c.l.b16 %v599
      %v653 = vunpack.c.l.b16 %v600
      %v654 = vunpack.c.l.b16 %v601
      %v655 = vunpack.c.l.b16 %v602
      %v656 = vpack.c.b16 %v653, %v652
      %v657 = vpack.c.b16 %v655, %v654
      %v661 = vsel %vm627, %v594, 0
      %663 = vmatpush.bf16.msra.mxu0 0
      %664 = vmatpush.bf16.msra.mxu0 0
      %665 = vmatpush.bf16.msra.mxu0 0
      %666 = vmatpush.bf16.msra.mxu0 0
      %667 = vmatpush.bf16.msra.mxu0 0
      %668 = vmatpush.bf16.msra.mxu0 0
      %669 = vmatpush.bf16.msra.mxu0 %v657
      %670 = vmatpush.bf16.msra.mxu0 %v656
      %671 = vmatmul.bf16.gmra.mxu0 %v661
      %v672 = vpop.f32.mrf.mxu0
      %v673 = vadd.f32 %v646, %v672
      %v674 = vpop.f32.mrf.mxu0
      %675 = vdwg.mxu0
      %v676 = vld [vmem:[%s573] sm:$0x1]
      %v678 = vperm.slane %v676, 0
      %v684 = vunpack.c.l.b16 %v603
      %v685 = vunpack.c.l.b16 %v604
      %v686 = vunpack.c.l.b16 %v605
      %v687 = vunpack.c.l.b16 %v606
      %v688 = vpack.c.b16 %v685, %v684
      %v689 = vpack.c.b16 %v687, %v686
      %692 = vmatpush.bf16.msra.mxu0 0
      %693 = vmatpush.bf16.msra.mxu0 0
      %694 = vmatpush.bf16.msra.mxu0 0
      %695 = vmatpush.bf16.msra.mxu0 0
      %696 = vmatpush.bf16.msra.mxu0 0
      %697 = vmatpush.bf16.msra.mxu0 0
      %698 = vmatpush.bf16.msra.mxu0 %v689
      %699 = vmatpush.bf16.msra.mxu0 %v688
      %700 = vmatmul.bf16.gmra.mxu0 %v661
      %v701 = vpop.f32.mrf.mxu0
      %v702 = vadd.f32 %v678, %v701
      %v703 = vpop.f32.mrf.mxu0
      %704 = vdwg.mxu0
      %v705 = vpack.c.bf16 %v641, %v641
      %v706 = vpack.c.bf16 %v673, %v673
      %v707 = vpack.c.bf16 %v702, %v702
      %vm708 = vcmask 130048
      %v710 = vsel %vm708, %v705, 0
      %v713 = vsel %vm708, %v706, 0
      %715 = vmatpush.bf16.xpose.msra.mxu0 0
      %716 = vmatpush.bf16.xpose.msra.mxu0 0
      %717 = vmatpush.bf16.xpose.msra.mxu0 0
      %718 = vmatpush.bf16.xpose.msra.mxu0 0
      %719 = vmatpush.bf16.xpose.msra.mxu0 0
      %720 = vmatpush.bf16.xpose.msra.mxu0 0
      %721 = vmatpush.bf16.xpose.msra.mxu0 0
      %722 = vmatpush.bf16.xpose.msra.mxu0 %v713
      %723 = vmatmul.bf16.gmra.mxu0 %v710
      %v724 = vpop.f32.mrf.mxu0
      %v725 = vadd.f32 0.0, %v724
      %v726 = vpop.f32.mrf.mxu0
      %727 = vdwg.mxu0
      %vm728 = vcmask 64512
      %v729 = vsel %vm728, %v725, -inf
      %730 = vmax.xlane.f32.xlu0 %v729
      %v731 = vpop.xlane.xlu0 %730
      %v732 = vsub.f32 %v725, %v731
      %v733 = vmul.f32 %v732, 1.442695
      %v734 = vpow.pop %v733
      %v735 = vsel %vm728, %v734, 0.0
      %736 = vadd.xlane.f32.xlu0 %v735
      %v737 = vpop.xlane.xlu0 %736
      %v738 = vpack.c.bf16 %v734, %v734
      %v740 = vsel %vm728, %v738, 0
      %vm742 = vcmask 1043456
      %v744 = vsel %vm742, %v707, 0
      %746 = vmatpush.bf16.msra.mxu0 0
      %747 = vmatpush.bf16.msra.mxu0 0
      %748 = vmatpush.bf16.msra.mxu0 0
      %749 = vmatpush.bf16.msra.mxu0 0
      %750 = vmatpush.bf16.msra.mxu0 0
      %751 = vmatpush.bf16.msra.mxu0 0
      %752 = vmatpush.bf16.msra.mxu0 0
      %753 = vmatpush.bf16.msra.mxu0 %v744
      %754 = vmatmul.bf16.gmra.mxu0 %v740
      %v755 = vpop.f32.mrf.mxu0
      %v756 = vadd.f32 0.0, %v755
      %v757 = vpop.f32.mrf.mxu0
      %758 = vdwg.mxu0
      %v759 = vrcp.pop %v737
      %v760 = vmul.f32 %v756, %v759
      %v761 = vld [vmem:[#allocation2] sm:$0xff]
      %v762 = vpack.c.bf16 %v760, %v760
      %v765 = vunpack.c.l.b16 %v607
      %v766 = vunpack.c.l.b16 %v608
      %v767 = vpack.c.b16 %v766, %v765
      %v770 = vsel %vm708, %v762, 0
      %772 = vmatpush.bf16.msra.mxu0 0
      %773 = vmatpush.bf16.msra.mxu0 0
      %774 = vmatpush.bf16.msra.mxu0 0
      %775 = vmatpush.bf16.msra.mxu0 0
      %776 = vmatpush.bf16.msra.mxu0 0
      %777 = vmatpush.bf16.msra.mxu0 0
      %778 = vmatpush.bf16.msra.mxu0 0
      %779 = vmatpush.bf16.msra.mxu0 %v767
      %780 = vmatmul.bf16.gmra.mxu0 %v770
      %v781 = vpop.f32.mrf.mxu0
      %v782 = vadd.f32 0.0, %v781
      %v783 = vpop.f32.mrf.mxu0
      %784 = vdwg.mxu0
      %v785 = vadd.f32 %v761, %v782
      %786 = vst.msk [vmem:[#allocation2] sm:$0xff] %vm627, %v785
      %788 = vrot.lane.b32.xlu0 %v705, 112
      %v789 = vpop.permute.xlu0 %788
      %791 = vrot.lane.b32.xlu0 %v706, 112
      %v792 = vpop.permute.xlu0 %791
      %v794 = vsel %vm708, %v789, 0
      %v797 = vsel %vm708, %v792, 0
      %799 = vmatpush.bf16.xpose.msra.mxu0 0
      %800 = vmatpush.bf16.xpose.msra.mxu0 0
      %801 = vmatpush.bf16.xpose.msra.mxu0 0
      %802 = vmatpush.bf16.xpose.msra.mxu0 0
      %803 = vmatpush.bf16.xpose.msra.mxu0 0
      %804 = vmatpush.bf16.xpose.msra.mxu0 0
      %805 = vmatpush.bf16.xpose.msra.mxu0 0
      %806 = vmatpush.bf16.xpose.msra.mxu0 %v797
      %807 = vmatmul.bf16.gmra.mxu0 %v794
      %v808 = vpop.f32.mrf.mxu0
      %v809 = vadd.f32 0.0, %v808
      %v810 = vpop.f32.mrf.mxu0
      %811 = vdwg.mxu0
      %v812 = vsel %vm728, %v809, -inf
      %813 = vmax.xlane.f32.xlu0 %v812
      %v814 = vpop.xlane.xlu0 %813
      %v815 = vsub.f32 %v809, %v814
      %v816 = vmul.f32 %v815, 1.442695
      %v817 = vpow.pop %v816
      %v818 = vsel %vm728, %v817, 0.0
      %819 = vadd.xlane.f32.xlu0 %v818
      %v820 = vpop.xlane.xlu0 %819
      %v821 = vpack.c.bf16 %v817, %v817
      %823 = vrot.lane.b32.xlu0 %v707, 112
      %v824 = vpop.permute.xlu0 %823
      %v826 = vsel %vm728, %v821, 0
      %v829 = vsel %vm742, %v824, 0
      %831 = vmatpush.bf16.msra.mxu0 0
      %832 = vmatpush.bf16.msra.mxu0 0
      %833 = vmatpush.bf16.msra.mxu0 0
      %834 = vmatpush.bf16.msra.mxu0 0
      %835 = vmatpush.bf16.msra.mxu0 0
      %836 = vmatpush.bf16.msra.mxu0 0
      %837 = vmatpush.bf16.msra.mxu0 0
      %838 = vmatpush.bf16.msra.mxu0 %v829
      %839 = vmatmul.bf16.gmra.mxu0 %v826
      %v840 = vpop.f32.mrf.mxu0
      %v841 = vadd.f32 0.0, %v840
      %v842 = vpop.f32.mrf.mxu0
      %843 = vdwg.mxu0
      %v844 = vrcp.pop %v820
      %v845 = vmul.f32 %v841, %v844
      %v846 = vld [vmem:[#allocation2] sm:$0xff]
      %v847 = vpack.c.bf16 %v845, %v845
      %v850 = vunpack.c.l.b16 %v609
      %v851 = vunpack.c.l.b16 %v610
      %v852 = vpack.c.b16 %v851, %v850
      %v855 = vsel %vm708, %v847, 0
      %857 = vmatpush.bf16.msra.mxu0 0
      %858 = vmatpush.bf16.msra.mxu0 0
      %859 = vmatpush.bf16.msra.mxu0 0
      %860 = vmatpush.bf16.msra.mxu0 0
      %861 = vmatpush.bf16.msra.mxu0 0
      %862 = vmatpush.bf16.msra.mxu0 0
      %863 = vmatpush.bf16.msra.mxu0 0
      %864 = vmatpush.bf16.msra.mxu0 %v852
      %865 = vmatmul.bf16.gmra.mxu0 %v855
      %v866 = vpop.f32.mrf.mxu0
      %v867 = vadd.f32 0.0, %v866
      %v868 = vpop.f32.mrf.mxu0
      %869 = vdwg.mxu0
      %v870 = vadd.f32 %v846, %v867
      %871 = vst.msk [vmem:[#allocation2] sm:$0xff] %vm627, %v870
      // Predicated region
      $region73: #{protbert_organism_classifier_forward.7} parent=67 // pred_check
        %p872 = pneg %p587
      $region74: #{protbert_organism_classifier_forward.7} parent=67 // pred_check_branch
        %874 = sbr.rel (%p872) target = $region76
      $region75: #{protbert_organism_classifier_forward.7} parent=67 // pred_region
        %v875 = vld [vmem:[#allocation2] sm:$0xff]
        %v876 = vld [vmem:[%s9] sm:$0x1]
        %v878 = vperm.slane %v876, 0
        %v880 = vadd.f32 %v875, %v878
        %v881 = vunpack.c.l.bf16 %v593
        %v882 = vadd.f32 %v881, %v880
        %v883 = vld [vmem:[%s10] sm:$0x1]
        %v884 = vld [vmem:[%s11] sm:$0x1]
        %v885 = vsel %vm627, %v882, 0.0
        %886 = vadd.xlane.f32.xlu0 %v885
        %v887 = vpop.xlane.xlu0 %886
        %v888 = vmul.f32 %v882, %v882
        %v889 = vsel %vm627, %v888, 0.0
        %890 = vadd.xlane.f32.xlu0 %v889
        %v891 = vpop.xlane.xlu0 %890
        %v892 = vmul.f32 %v887, 0.03125
        %v893 = vmul.f32 %v891, 0.03125
        %v894 = vmul.f32 %v892, %v892
        %v895 = vsub.f32 %v893, %v894
        %v896 = vsub.f32 %v882, %v892
        %v897 = vadd.f32 %v895, 1e-12
        %v898 = vrsqrt.pop %v897
        %v899 = vmul.f32 %v898, %v897
        %v900 = vmul.f32 %v899, %v898
        %v901 = vmul.f32 0.5, %v900
        %v902 = vsub.f32 1.5, %v901
        %v903 = vmul.f32 %v898, %v902
        %vm904 = vweird.f32 %v897
        %vm905 = vweird.f32 %v898
        %vm906 = vmor %vm904, %vm905
        %v907 = vsel %vm906, %v898, %v903
        %v908 = vmul.f32 %v896, %v907
        %v910 = vperm.slane %v883, 0
        %v912 = vmul.f32 %v908, %v910
        %v914 = vperm.slane %v884, 0
        %v916 = vadd.f32 %v912, %v914
        %v917 = vpack.c.bf16 %v916, %v916
        %vm918 = vcmask 257024
        %919 = vst.msk [vmem:[%s585] sm:$0xf] %vm918, %v917
      $region76: #{protbert_organism_classifier_forward.7} parent=67 // pred_fallthru
        _
      %p920 = scmp.lt.s32.totalorder %s28, 1
      %s921 = scalar_select %p920, %s28, 1
      %p922 = scmp.lt.s32.totalorder %s29, 0
      %s923 = scalar_select %p922, %s29, 0
      %s924 = sadd.s32 %s923, %s921
      %s925 = smul.addr %s924, 4
      %s926 = scalar_lea.vmem %s12, %s925
      // Predicated region
      $region77: #{protbert_organism_classifier_forward.7} parent=67 // pred_check
        %p927 = pneg %p361
      $region78: #{protbert_organism_classifier_forward.7} parent=67 // pred_check_branch
        %929 = sbr.rel (%p927) target = $region80
      $region79: #{protbert_organism_classifier_forward.7} parent=67 // pred_region
        _
      $region80: #{protbert_organism_classifier_forward.7} parent=67 // pred_fallthru
        _
    $region68: #{protbert_organism_classifier_forward.7} parent=5 // pred_fallthru
      _
    %p930 = scmp.le.s32.totalorder 2, %s18
    // Predicated region
    $region81: #{protbert_organism_classifier_forward.7} parent=5 // pred_check
      %p931 = pneg %p930
    $region82: #{protbert_organism_classifier_forward.7} parent=5 // pred_check_branch
      %933 = sbr.rel (%p931) target = $region84
    $region83: #{protbert_organism_classifier_forward.7} parent=5 // pred_region
      %s934 = ssub.s32 %s18, 2
      // Predicated region
      $region85: #{protbert_organism_classifier_forward.7} parent=83 // pred_check
        %p935 = pneg %p367
      $region86: #{protbert_organism_classifier_forward.7} parent=83 // pred_check_branch
        %937 = sbr.rel (%p935) target = $region88
      $region87: #{protbert_organism_classifier_forward.7} parent=83 // pred_region
        %p938 = scmp.lt.s32.totalorder %s31, 1
        %s939 = scalar_select %p938, %s31, 1
        %p940 = scmp.lt.s32.totalorder %s32, 0
        %s941 = scalar_select %p940, %s32, 0
        %s942 = sadd.s32 %s941, %s939
        %s943 = smul.addr %s942, 4
        %s944 = scalar_lea.vmem %s12, %s943
      $region88: #{protbert_organism_classifier_forward.7} parent=83 // pred_fallthru
        _
    $region84: #{protbert_organism_classifier_forward.7} parent=5 // pred_fallthru
      _
  $region6: #{protbert_organism_classifier_forward.7} parent=0 // loop_footer
    %s22 = sadd.s32 1, %s18
  $region7: #{protbert_organism_classifier_forward.7} parent=0 // loop_footer_branch
    %17 = sbr.rel target = $region3
  $region8: #{protbert_organism_classifier_forward.7} parent=0 // loop_exit
    _

</llo_original>
